<compile_context>
chip_gen: v6e
topology: v6e:2x2x1
jax: 0.10.0
libtpu: 0.0.40
codegen_flags: <defaults>
</compile_context>

<pallas_src>
import functools

import jax
import jax.numpy as jnp
from jax.experimental import pallas as pl
from jax.experimental.pallas import tpu as pltpu


def _ensemble_mean_kernel(x_ref, w_ref, b_ref, o_ref, *,
                          n_ensemble, n_classes, apply_softmax):
    """One grid step = one batch tile; all E members handled in one matmul.

    x_ref : (BT, D)        bf16  -- batch tile of flattened inputs
    w_ref : (D, E*NCLS)    bf16  -- all member weights, concatenated along N
    b_ref : (1, E*NCLS)    f32   -- all member biases
    o_ref : (BT, NCLS)     f32   -- mean over E of (softmax of) member logits
    """
    # Single MXU matmul covering every ensemble member (bf16 in, f32 acc).
    logits_all = jnp.dot(
        x_ref[...], w_ref[...], preferred_element_type=jnp.float32
    ) + b_ref[...]                                   # (BT, E*NCLS) f32

    acc = jnp.zeros((x_ref.shape[0], n_classes), jnp.float32)
    for e in range(n_ensemble):                      # static unroll, lane-aligned slices
        logits = logits_all[:, e * n_classes:(e + 1) * n_classes]   # (BT, NCLS)
        if apply_softmax:
            m = jnp.max(logits, axis=-1, keepdims=True)
            p = jnp.exp(logits - m)
            inv = pl.reciprocal(jnp.sum(p, axis=-1, keepdims=True), approx=True)
            member = p * inv
        else:
            member = logits
        acc = acc + member

    o_ref[...] = (acc * (1.0 / n_ensemble)).astype(o_ref.dtype)


def ensemble_forward(x_nchw, weights, biases, *, apply_softmax=True):
    """Ensemble(inference='mean').forward equivalent.

    x_nchw : (B, C, H, W)
    weights: (E, D, NCLS)  with D = C*H*W   (any float dtype; streamed as bf16)
    biases : (E, NCLS)
    returns: (B, NCLS) f32 = mean over E of (softmax of) per-member logits
    """
    B = x_nchw.shape[0]
    E, D, NCLS = weights.shape

    # One-time wrapper-side layout prep (plain JAX, outside the hot loop).
    x_flat = x_nchw.reshape(B, D).astype(jnp.bfloat16)                       # (B, D)
    w_cat = jnp.transpose(weights, (1, 0, 2)).reshape(D, E * NCLS)           # (D, E*NCLS)
    w_cat = w_cat.astype(jnp.bfloat16)
    b_cat = biases.reshape(1, E * NCLS).astype(jnp.float32)                  # (1, E*NCLS)

    # Batch tile: shardable "parallel" axis.  For tiny B the block is the full
    # array (so the (8,128) divisibility rule does not apply).
    bt = B
    for cand in (256, 128, 64, 32, 16, 8):
        if B % cand == 0:
            bt = cand
            break
    nb = B // bt

    kernel = functools.partial(
        _ensemble_mean_kernel,
        n_ensemble=E, n_classes=NCLS, apply_softmax=apply_softmax,
    )

    bytes_accessed = (B * D * 2) + (D * E * NCLS * 2) + (E * NCLS * 4) + (B * NCLS * 4)
    cost = pl.CostEstimate(
        flops=2 * B * D * E * NCLS,
        transcendentals=(B * E * NCLS) if apply_softmax else 0,
        bytes_accessed=bytes_accessed,
    )

    return pl.pallas_call(
        kernel,
        out_shape=jax.ShapeDtypeStruct((B, NCLS), jnp.float32),
        grid_spec=pltpu.PrefetchScalarGridSpec(
            num_scalar_prefetch=0,
            grid=(nb,),
            in_specs=[
                pl.BlockSpec((bt, D), lambda i: (i, 0)),          # batch tile
                pl.BlockSpec((D, E * NCLS), lambda i: (0, 0)),    # all weights, resident
                pl.BlockSpec((1, E * NCLS), lambda i: (0, 0)),    # all biases, loaded once
            ],
            out_specs=pl.BlockSpec((bt, NCLS), lambda i: (i, 0)),
        ),
        compiler_params=pltpu.CompilerParams(
            dimension_semantics=("parallel",),    # batch tiles are independent
        ),
        cost_estimate=cost,
    )(x_flat, w_cat, b_cat)


def ensemble_forward_ref(x_nchw, weights, biases, *, apply_softmax=True):
    """Pure-JAX reference mirroring the PyTorch 'mean' inference semantics.

    Uses the same bf16-rounded inputs as the kernel so tolerances stay tight.
    """
    B = x_nchw.shape[0]
    E, D, NCLS = weights.shape
    x_flat = x_nchw.reshape(B, D).astype(jnp.bfloat16).astype(jnp.float32)
    w = weights.astype(jnp.bfloat16).astype(jnp.float32)
    logits = jnp.einsum("bd,edc->ebc", x_flat, w) \
        + biases.astype(jnp.float32)[:, None, :]
    if apply_softmax:
        logits = jax.nn.softmax(logits, axis=-1)
    return jnp.mean(logits, axis=0)


if __name__ == "__main__":
    # Small, NCHW-consistent shapes.
    B, C, H, W = 2, 4, 16, 16          # input image batch (NCHW)
    E = 4                              # ensemble members
    D = C * H * W                      # 1024 flattened features
    NCLS = 128                         # number of classes (lane-dense, multiple of 128)

    key = jax.random.PRNGKey(0)
    kx, kw, kb = jax.random.split(key, 3)
    x = jax.random.normal(kx, (B, C, H, W), dtype=jnp.float32)
    weights = 0.05 * jax.random.normal(kw, (E, D, NCLS), dtype=jnp.float32)
    biases = 0.05 * jax.random.normal(kb, (E, NCLS), dtype=jnp.float32)

    out = ensemble_forward(x, weights, biases, apply_softmax=True)
    out = jax.block_until_ready(out)

    ref = ensemble_forward_ref(x, weights, biases, apply_softmax=True)
    assert out.shape == (B, NCLS), out.shape
    # Tolerance accounts for bf16 MXU inputs + approx EUP reciprocal in softmax.
    assert jnp.allclose(out, ref, atol=5e-3, rtol=5e-3), \
        float(jnp.max(jnp.abs(out - ref)))

    # TODO(synk): get_unc() uncertainty heads (Var(Mean)/Var(Max)/MI) and the
    # 'samples'/'deterministic' inference paths are not part of this forward kernel.
    print("KERNEL_OK")
</pallas_src>

<mosaic_0001>
module attributes {stable_mosaic.version = 11 : i64} {
  func.func @_ensemble_mean_kernel(%arg0: i32, %arg1: memref<2x1024xbf16, #tpu.memory_space<vmem>>, %arg2: memref<1024x512xbf16, #tpu.memory_space<vmem>>, %arg3: memref<1x512xf32, #tpu.memory_space<vmem>>, %arg4: memref<2x128xf32, #tpu.memory_space<vmem>>) attributes {dimension_semantics = [#tpu.dimension_semantics<parallel>], iteration_bounds = array<i64: 1>, scalar_prefetch = 0 : i64, scratch_operands = 0 : i64, tpu.core_type = #tpu.core_type<tc>, window_params = [{transform_indices = @transform_0, window_bounds = array<i64: 2, 1024>}, {pipeline_mode = #tpu.pipeline_mode<synchronous>, transform_indices = @transform_1, window_bounds = array<i64: 1024, 512>}, {pipeline_mode = #tpu.pipeline_mode<synchronous>, transform_indices = @transform_2, window_bounds = array<i64: 1, 512>}, {transform_indices = @transform_3, window_bounds = array<i64: 2, 128>}]} {
    %c0 = arith.constant 0 : index
    %c0_0 = arith.constant 0 : index
    %0 = vector.load %arg1[%c0, %c0_0] : memref<2x1024xbf16, #tpu.memory_space<vmem>>, vector<2x1024xbf16>
    %c0_1 = arith.constant 0 : index
    %c0_2 = arith.constant 0 : index
    %1 = vector.load %arg2[%c0_1, %c0_2] : memref<1024x512xbf16, #tpu.memory_space<vmem>>, vector<1024x512xbf16>
    %cst = arith.constant dense<0.000000e+00> : vector<2x512xf32>
    %2 = tpu.matmul %0, %1, %cst {dimension_numbers = #tpu.dot_dimension_numbers<[1], [0], [0], [1], [0, 0, 1, 1], [], []>} : vector<2x1024xbf16>, vector<1024x512xbf16>, vector<2x512xf32> -> vector<2x512xf32>
    %c0_3 = arith.constant 0 : index
    %c0_4 = arith.constant 0 : index
    %3 = vector.load %arg3[%c0_3, %c0_4] : memref<1x512xf32, #tpu.memory_space<vmem>>, vector<1x512xf32>
    %4 = vector.broadcast %3 : vector<1x512xf32> to vector<2x512xf32>
    %5 = arith.addf %2, %4 : vector<2x512xf32>
    %cst_5 = arith.constant 0.000000e+00 : f32
    %6 = vector.broadcast %cst_5 : f32 to vector<2x128xf32>
    %7 = vector.extract_strided_slice %5 {offsets = [0, 0], sizes = [2, 128], strides = [1, 1]} : vector<2x512xf32> to vector<2x128xf32>
    %cst_6 = arith.constant dense<0xFF800000> : vector<2xf32>
    %8 = vector.multi_reduction <maximumf>, %7, %cst_6 [1] : vector<2x128xf32> to vector<2xf32>
    %9 = vector.shape_cast %8 : vector<2xf32> to vector<2x1xf32>
    %10 = vector.broadcast %9 : vector<2x1xf32> to vector<2x128xf32>
    %11 = arith.subf %7, %10 : vector<2x128xf32>
    %12 = math.exp %11 : vector<2x128xf32>
    %cst_7 = arith.constant dense<0.000000e+00> : vector<2xf32>
    %13 = vector.multi_reduction <add>, %12, %cst_7 [1] : vector<2x128xf32> to vector<2xf32>
    %14 = vector.shape_cast %13 : vector<2xf32> to vector<2x1xf32>
    %15 = tpu.reciprocal %14 {approx = true} : vector<2x1xf32> -> vector<2x1xf32>
    %16 = vector.broadcast %15 : vector<2x1xf32> to vector<2x128xf32>
    %17 = arith.mulf %12, %16 : vector<2x128xf32>
    %18 = arith.addf %6, %17 : vector<2x128xf32>
    %19 = vector.extract_strided_slice %5 {offsets = [0, 128], sizes = [2, 128], strides = [1, 1]} : vector<2x512xf32> to vector<2x128xf32>
    %cst_8 = arith.constant dense<0xFF800000> : vector<2xf32>
    %20 = vector.multi_reduction <maximumf>, %19, %cst_8 [1] : vector<2x128xf32> to vector<2xf32>
    %21 = vector.shape_cast %20 : vector<2xf32> to vector<2x1xf32>
    %22 = vector.broadcast %21 : vector<2x1xf32> to vector<2x128xf32>
    %23 = arith.subf %19, %22 : vector<2x128xf32>
    %24 = math.exp %23 : vector<2x128xf32>
    %cst_9 = arith.constant dense<0.000000e+00> : vector<2xf32>
    %25 = vector.multi_reduction <add>, %24, %cst_9 [1] : vector<2x128xf32> to vector<2xf32>
    %26 = vector.shape_cast %25 : vector<2xf32> to vector<2x1xf32>
    %27 = tpu.reciprocal %26 {approx = true} : vector<2x1xf32> -> vector<2x1xf32>
    %28 = vector.broadcast %27 : vector<2x1xf32> to vector<2x128xf32>
    %29 = arith.mulf %24, %28 : vector<2x128xf32>
    %30 = arith.addf %18, %29 : vector<2x128xf32>
    %31 = vector.extract_strided_slice %5 {offsets = [0, 256], sizes = [2, 128], strides = [1, 1]} : vector<2x512xf32> to vector<2x128xf32>
    %cst_10 = arith.constant dense<0xFF800000> : vector<2xf32>
    %32 = vector.multi_reduction <maximumf>, %31, %cst_10 [1] : vector<2x128xf32> to vector<2xf32>
    %33 = vector.shape_cast %32 : vector<2xf32> to vector<2x1xf32>
    %34 = vector.broadcast %33 : vector<2x1xf32> to vector<2x128xf32>
    %35 = arith.subf %31, %34 : vector<2x128xf32>
    %36 = math.exp %35 : vector<2x128xf32>
    %cst_11 = arith.constant dense<0.000000e+00> : vector<2xf32>
    %37 = vector.multi_reduction <add>, %36, %cst_11 [1] : vector<2x128xf32> to vector<2xf32>
    %38 = vector.shape_cast %37 : vector<2xf32> to vector<2x1xf32>
    %39 = tpu.reciprocal %38 {approx = true} : vector<2x1xf32> -> vector<2x1xf32>
    %40 = vector.broadcast %39 : vector<2x1xf32> to vector<2x128xf32>
    %41 = arith.mulf %36, %40 : vector<2x128xf32>
    %42 = arith.addf %30, %41 : vector<2x128xf32>
    %43 = vector.extract_strided_slice %5 {offsets = [0, 384], sizes = [2, 128], strides = [1, 1]} : vector<2x512xf32> to vector<2x128xf32>
    %cst_12 = arith.constant dense<0xFF800000> : vector<2xf32>
    %44 = vector.multi_reduction <maximumf>, %43, %cst_12 [1] : vector<2x128xf32> to vector<2xf32>
    %45 = vector.shape_cast %44 : vector<2xf32> to vector<2x1xf32>
    %46 = vector.broadcast %45 : vector<2x1xf32> to vector<2x128xf32>
    %47 = arith.subf %43, %46 : vector<2x128xf32>
    %48 = math.exp %47 : vector<2x128xf32>
    %cst_13 = arith.constant dense<0.000000e+00> : vector<2xf32>
    %49 = vector.multi_reduction <add>, %48, %cst_13 [1] : vector<2x128xf32> to vector<2xf32>
    %50 = vector.shape_cast %49 : vector<2xf32> to vector<2x1xf32>
    %51 = tpu.reciprocal %50 {approx = true} : vector<2x1xf32> -> vector<2x1xf32>
    %52 = vector.broadcast %51 : vector<2x1xf32> to vector<2x128xf32>
    %53 = arith.mulf %48, %52 : vector<2x128xf32>
    %54 = arith.addf %42, %53 : vector<2x128xf32>
    %cst_14 = arith.constant 2.500000e-01 : f32
    %55 = vector.broadcast %cst_14 : f32 to vector<2x128xf32>
    %56 = arith.mulf %54, %55 : vector<2x128xf32>
    %c0_15 = arith.constant 0 : index
    %c0_16 = arith.constant 0 : index
    %57 = vector.load %arg4[%c0_15, %c0_16] : memref<2x128xf32, #tpu.memory_space<vmem>>, vector<2x128xf32>
    tpu.vector_store %arg4[%c0_15, %c0_16], %56 {strides = array<i32>} : memref<2x128xf32, #tpu.memory_space<vmem>>, vector<2x128xf32>,
    return
  }
  func.func @transform_0(%arg0: i32) -> (i32, i32) {
    %c0_i32 = arith.constant 0 : i32
    %c0_i32_0 = arith.constant 0 : i32
    return %arg0, %c0_i32 : i32, i32
  }
  func.func @transform_1(%arg0: i32) -> (i32, i32) {
    %c0_i32 = arith.constant 0 : i32
    %c0_i32_0 = arith.constant 0 : i32
    %c0_i32_1 = arith.constant 0 : i32
    return %c0_i32, %c0_i32_0 : i32, i32
  }
  func.func @transform_2(%arg0: i32) -> (i32, i32) {
    %c0_i32 = arith.constant 0 : i32
    %c0_i32_0 = arith.constant 0 : i32
    %c0_i32_1 = arith.constant 0 : i32
    return %c0_i32, %c0_i32_0 : i32, i32
  }
  func.func @transform_3(%arg0: i32) -> (i32, i32) {
    %c0_i32 = arith.constant 0 : i32
    %c0_i32_0 = arith.constant 0 : i32
    return %arg0, %c0_i32 : i32, i32
  }
}

</mosaic_0001>

<llo_original>
// kernel: tpu_custom_call.1
$region0: #{tpu_custom_call.1}
  #allocation0 [shape = 'u32[]', space=smem, size = 0x4, offset = 0x4, fixed_abs, tag = 'smem constant byte address 0x4 - core index']
  #allocation1 [shape = 'u32[144,128]{1,0:T(1,128)}', space=vmem, size = 0x12000, scoped, tag = 'internal scratch']
  %s0 = inlined_call_operand.hbm [shape: bf16[2,1024], index: 0, kind: input, shape index: {}]
  %s1 = inlined_call_operand.hbm [shape: bf16[1024,512], index: 1, kind: input, shape index: {}]
  %s2 = inlined_call_operand.hbm [shape: f32[1,512], index: 2, kind: input, shape index: {}]
  %s3 = inlined_call_operand.hbm [shape: f32[2,128], index: 3, kind: output, shape index: {}]
  %s4 = sld [smem:[#allocation0]]
  $region34: #{tpu_custom_call.1} parent=0
    _
  %s6 = ssub.s32 1, %s4
  %s7 = scalar_select 0, %s6, %s4
  $region1: #{tpu_custom_call.1} parent=0
    #allocation2 [shape = 'u8[4096]{0}', space=vmem, size = 0x1000, scoped, tag = 'input window, operand 0, single buffered']
    #allocation3 [shape = 's32[1]{0}', space=sflag, size = 0x4, scoped, tag = 'scoped memory for tpu_custom_call.1']
    #allocation4 [shape = 's32[1]{0}', space=sflag, size = 0x4, scoped, tag = 'scoped memory for tpu_custom_call.1']
    #allocation5 [shape = 'u8[1048576]{0}', space=vmem, size = 0x100000, scoped, tag = 'input window, operand 1, single buffered']
    #allocation6 [shape = 's32[1]{0}', space=sflag, size = 0x4, scoped, tag = 'scoped memory for tpu_custom_call.1']
    #allocation7 [shape = 'u8[2048]{0}', space=vmem, size = 0x800, scoped, tag = 'input window, operand 2, single buffered']
    #allocation8 [shape = 'u8[1024]{0}', space=vmem, size = 0x400, scoped, tag = 'output window, operand 0, single buffered']
    %8 = vsyncpa [#allocation3], 0
    %9 = vsyncpa [#allocation6], 0
    %10 = vsyncpa [#allocation4], 0
    // Predicated region
    $region2: #{tpu_custom_call.1} parent=1 // pred_check
      _
    $region3: #{tpu_custom_call.1} parent=1 // pred_check_branch
      %12 = sbr.rel (0) target = $region5
    $region4: #{tpu_custom_call.1} parent=1 // pred_region
      %s14 = ssub.s32 128, 128
      %15 = vsyncadd [#allocation3], %s14
      %s17 = sshll.u32 [#allocation2], 4
      %s18 = int_to_ptr.vmem [resolvable:$true] %s17
      %20 = dma.hbm_to_vmem [thread:$0]  %s0, 128, %s18, [#allocation3]
    $region5: #{tpu_custom_call.1} parent=1 // pred_fallthru
      _
    // Predicated region
    $region6: #{tpu_custom_call.1} parent=1 // pred_check
      _
    $region7: #{tpu_custom_call.1} parent=1 // pred_check_branch
      %22 = sbr.rel (0) target = $region9
    $region8: #{tpu_custom_call.1} parent=1 // pred_region
      %s24 = ssub.s32 32768, 32768
      %25 = vsyncadd [#allocation6], %s24
      %s26 = sshll.u32 [#allocation5], 4
      %s27 = int_to_ptr.vmem [resolvable:$true] %s26
      %32 = dma.hbm_to_vmem [thread:$0]  %s1, 32768, %s27, [#allocation6], 256, 256, 16
    $region9: #{tpu_custom_call.1} parent=1 // pred_fallthru
      _
    // Predicated region
    $region10: #{tpu_custom_call.1} parent=1 // pred_check
      _
    $region11: #{tpu_custom_call.1} parent=1 // pred_check_branch
      %34 = sbr.rel (0) target = $region13
    $region12: #{tpu_custom_call.1} parent=1 // pred_region
      %s36 = ssub.s32 64, 64
      %37 = vsyncadd [#allocation6], %s36
      %s39 = sshll.u32 [#allocation7], 4
      %s40 = int_to_ptr.vmem [resolvable:$true] %s39
      %42 = dma.hbm_to_vmem [thread:$0]  %s2, 64, %s40, [#allocation6]
    $region13: #{tpu_custom_call.1} parent=1 // pred_fallthru
      _
    // Predicated region
    $region14: #{tpu_custom_call.1} parent=1 // pred_check
      _
    $region15: #{tpu_custom_call.1} parent=1 // pred_check_branch
      %44 = sbr.rel (0) target = $region17
    $region16: #{tpu_custom_call.1} parent=1 // pred_region
      %45 = dma.done [#allocation3], 128
    $region17: #{tpu_custom_call.1} parent=1 // pred_fallthru
      _
    // Predicated region
    $region18: #{tpu_custom_call.1} parent=1 // pred_check
      _
    $region19: #{tpu_custom_call.1} parent=1 // pred_check_branch
      %47 = sbr.rel (0) target = $region21
    $region20: #{tpu_custom_call.1} parent=1 // pred_region
      %48 = dma.done [#allocation6], 32768
    $region21: #{tpu_custom_call.1} parent=1 // pred_fallthru
      _
    // Predicated region
    $region22: #{tpu_custom_call.1} parent=1 // pred_check
      _
    $region23: #{tpu_custom_call.1} parent=1 // pred_check_branch
      %50 = sbr.rel (0) target = $region25
    $region24: #{tpu_custom_call.1} parent=1 // pred_region
      %51 = dma.done [#allocation6], 64
    $region25: #{tpu_custom_call.1} parent=1 // pred_fallthru
      _
    %v52 = vld [vmem:[#allocation2] sm:$0xff]
    %v53 = vld [vmem:[#allocation5] sm:$0xff]
    %v54 = vld [vmem:[#allocation5 + $0x8] sm:$0xff]
    %v55 = vld [vmem:[#allocation5 + $0x10] sm:$0xff]
    %v56 = vld [vmem:[#allocation5 + $0x18] sm:$0xff]
    %v57 = vld [vmem:[#allocation5 + $0x20] sm:$0xff]
    %v58 = vld [vmem:[#allocation5 + $0x28] sm:$0xff]
    %v59 = vld [vmem:[#allocation5 + $0x30] sm:$0xff]
    %v60 = vld [vmem:[#allocation5 + $0x38] sm:$0xff]
    %v61 = vld [vmem:[#allocation5 + $0x40] sm:$0xff]
    %v62 = vld [vmem:[#allocation5 + $0x48] sm:$0xff]
    %v63 = vld [vmem:[#allocation5 + $0x50] sm:$0xff]
    %v64 = vld [vmem:[#allocation5 + $0x58] sm:$0xff]
    %v65 = vld [vmem:[#allocation5 + $0x60] sm:$0xff]
    %v66 = vld [vmem:[#allocation5 + $0x68] sm:$0xff]
    %v67 = vld [vmem:[#allocation5 + $0x70] sm:$0xff]
    %v68 = vld [vmem:[#allocation5 + $0x78] sm:$0xff]
    %v69 = vld [vmem:[#allocation5 + $0x80] sm:$0xff]
    %v70 = vld [vmem:[#allocation5 + $0x88] sm:$0xff]
    %v71 = vld [vmem:[#allocation5 + $0x90] sm:$0xff]
    %v72 = vld [vmem:[#allocation5 + $0x98] sm:$0xff]
    %v73 = vld [vmem:[#allocation5 + $0xa0] sm:$0xff]
    %v74 = vld [vmem:[#allocation5 + $0xa8] sm:$0xff]
    %v75 = vld [vmem:[#allocation5 + $0xb0] sm:$0xff]
    %v76 = vld [vmem:[#allocation5 + $0xb8] sm:$0xff]
    %v77 = vld [vmem:[#allocation5 + $0xc0] sm:$0xff]
    %v78 = vld [vmem:[#allocation5 + $0xc8] sm:$0xff]
    %v79 = vld [vmem:[#allocation5 + $0xd0] sm:$0xff]
    %v80 = vld [vmem:[#allocation5 + $0xd8] sm:$0xff]
    %v81 = vld [vmem:[#allocation5 + $0xe0] sm:$0xff]
    %v82 = vld [vmem:[#allocation5 + $0xe8] sm:$0xff]
    %v83 = vld [vmem:[#allocation5 + $0xf0] sm:$0xff]
    %v84 = vld [vmem:[#allocation5 + $0xf8] sm:$0xff]
    %v85 = vld [vmem:[#allocation5 + $0x100] sm:$0xff]
    %v86 = vld [vmem:[#allocation5 + $0x108] sm:$0xff]
    %v87 = vld [vmem:[#allocation5 + $0x110] sm:$0xff]
    %v88 = vld [vmem:[#allocation5 + $0x118] sm:$0xff]
    %v89 = vld [vmem:[#allocation5 + $0x120] sm:$0xff]
    %v90 = vld [vmem:[#allocation5 + $0x128] sm:$0xff]
    %v91 = vld [vmem:[#allocation5 + $0x130] sm:$0xff]
    %v92 = vld [vmem:[#allocation5 + $0x138] sm:$0xff]
    %v93 = vld [vmem:[#allocation5 + $0x140] sm:$0xff]
    %v94 = vld [vmem:[#allocation5 + $0x148] sm:$0xff]
    %v95 = vld [vmem:[#allocation5 + $0x150] sm:$0xff]
    %v96 = vld [vmem:[#allocation5 + $0x158] sm:$0xff]
    %v97 = vld [vmem:[#allocation5 + $0x160] sm:$0xff]
    %v98 = vld [vmem:[#allocation5 + $0x168] sm:$0xff]
    %v99 = vld [vmem:[#allocation5 + $0x170] sm:$0xff]
    %v100 = vld [vmem:[#allocation5 + $0x178] sm:$0xff]
    %v101 = vld [vmem:[#allocation5 + $0x180] sm:$0xff]
    %v102 = vld [vmem:[#allocation5 + $0x188] sm:$0xff]
    %v103 = vld [vmem:[#allocation5 + $0x190] sm:$0xff]
    %v104 = vld [vmem:[#allocation5 + $0x198] sm:$0xff]
    %v105 = vld [vmem:[#allocation5 + $0x1a0] sm:$0xff]
    %v106 = vld [vmem:[#allocation5 + $0x1a8] sm:$0xff]
    %v107 = vld [vmem:[#allocation5 + $0x1b0] sm:$0xff]
    %v108 = vld [vmem:[#allocation5 + $0x1b8] sm:$0xff]
    %v109 = vld [vmem:[#allocation5 + $0x1c0] sm:$0xff]
    %v110 = vld [vmem:[#allocation5 + $0x1c8] sm:$0xff]
    %v111 = vld [vmem:[#allocation5 + $0x1d0] sm:$0xff]
    %v112 = vld [vmem:[#allocation5 + $0x1d8] sm:$0xff]
    %v113 = vld [vmem:[#allocation5 + $0x1e0] sm:$0xff]
    %v114 = vld [vmem:[#allocation5 + $0x1e8] sm:$0xff]
    %v115 = vld [vmem:[#allocation5 + $0x1f0] sm:$0xff]
    %v116 = vld [vmem:[#allocation5 + $0x1f8] sm:$0xff]
    %v117 = vld [vmem:[#allocation5 + $0x200] sm:$0xff]
    %v118 = vld [vmem:[#allocation5 + $0x208] sm:$0xff]
    %v119 = vld [vmem:[#allocation5 + $0x210] sm:$0xff]
    %v120 = vld [vmem:[#allocation5 + $0x218] sm:$0xff]
    %v121 = vld [vmem:[#allocation5 + $0x220] sm:$0xff]
    %v122 = vld [vmem:[#allocation5 + $0x228] sm:$0xff]
    %v123 = vld [vmem:[#allocation5 + $0x230] sm:$0xff]
    %v124 = vld [vmem:[#allocation5 + $0x238] sm:$0xff]
    %v125 = vld [vmem:[#allocation5 + $0x240] sm:$0xff]
    %v126 = vld [vmem:[#allocation5 + $0x248] sm:$0xff]
    %v127 = vld [vmem:[#allocation5 + $0x250] sm:$0xff]
    %v128 = vld [vmem:[#allocation5 + $0x258] sm:$0xff]
    %v129 = vld [vmem:[#allocation5 + $0x260] sm:$0xff]
    %v130 = vld [vmem:[#allocation5 + $0x268] sm:$0xff]
    %v131 = vld [vmem:[#allocation5 + $0x270] sm:$0xff]
    %v132 = vld [vmem:[#allocation5 + $0x278] sm:$0xff]
    %v133 = vld [vmem:[#allocation5 + $0x280] sm:$0xff]
    %v134 = vld [vmem:[#allocation5 + $0x288] sm:$0xff]
    %v135 = vld [vmem:[#allocation5 + $0x290] sm:$0xff]
    %v136 = vld [vmem:[#allocation5 + $0x298] sm:$0xff]
    %v137 = vld [vmem:[#allocation5 + $0x2a0] sm:$0xff]
    %v138 = vld [vmem:[#allocation5 + $0x2a8] sm:$0xff]
    %v139 = vld [vmem:[#allocation5 + $0x2b0] sm:$0xff]
    %v140 = vld [vmem:[#allocation5 + $0x2b8] sm:$0xff]
    %v141 = vld [vmem:[#allocation5 + $0x2c0] sm:$0xff]
    %v142 = vld [vmem:[#allocation5 + $0x2c8] sm:$0xff]
    %v143 = vld [vmem:[#allocation5 + $0x2d0] sm:$0xff]
    %v144 = vld [vmem:[#allocation5 + $0x2d8] sm:$0xff]
    %v145 = vld [vmem:[#allocation5 + $0x2e0] sm:$0xff]
    %v146 = vld [vmem:[#allocation5 + $0x2e8] sm:$0xff]
    %v147 = vld [vmem:[#allocation5 + $0x2f0] sm:$0xff]
    %v148 = vld [vmem:[#allocation5 + $0x2f8] sm:$0xff]
    %v149 = vld [vmem:[#allocation5 + $0x300] sm:$0xff]
    %v150 = vld [vmem:[#allocation5 + $0x308] sm:$0xff]
    %v151 = vld [vmem:[#allocation5 + $0x310] sm:$0xff]
    %v152 = vld [vmem:[#allocation5 + $0x318] sm:$0xff]
    %v153 = vld [vmem:[#allocation5 + $0x320] sm:$0xff]
    %v154 = vld [vmem:[#allocation5 + $0x328] sm:$0xff]
    %v155 = vld [vmem:[#allocation5 + $0x330] sm:$0xff]
    %v156 = vld [vmem:[#allocation5 + $0x338] sm:$0xff]
    %v157 = vld [vmem:[#allocation5 + $0x340] sm:$0xff]
    %v158 = vld [vmem:[#allocation5 + $0x348] sm:$0xff]
    %v159 = vld [vmem:[#allocation5 + $0x350] sm:$0xff]
    %v160 = vld [vmem:[#allocation5 + $0x358] sm:$0xff]
    %v161 = vld [vmem:[#allocation5 + $0x360] sm:$0xff]
    %v162 = vld [vmem:[#allocation5 + $0x368] sm:$0xff]
    %v163 = vld [vmem:[#allocation5 + $0x370] sm:$0xff]
    %v164 = vld [vmem:[#allocation5 + $0x378] sm:$0xff]
    %v165 = vld [vmem:[#allocation5 + $0x380] sm:$0xff]
    %v166 = vld [vmem:[#allocation5 + $0x388] sm:$0xff]
    %v167 = vld [vmem:[#allocation5 + $0x390] sm:$0xff]
    %v168 = vld [vmem:[#allocation5 + $0x398] sm:$0xff]
    %v169 = vld [vmem:[#allocation5 + $0x3a0] sm:$0xff]
    %v170 = vld [vmem:[#allocation5 + $0x3a8] sm:$0xff]
    %v171 = vld [vmem:[#allocation5 + $0x3b0] sm:$0xff]
    %v172 = vld [vmem:[#allocation5 + $0x3b8] sm:$0xff]
    %v173 = vld [vmem:[#allocation5 + $0x3c0] sm:$0xff]
    %v174 = vld [vmem:[#allocation5 + $0x3c8] sm:$0xff]
    %v175 = vld [vmem:[#allocation5 + $0x3d0] sm:$0xff]
    %v176 = vld [vmem:[#allocation5 + $0x3d8] sm:$0xff]
    %v177 = vld [vmem:[#allocation5 + $0x3e0] sm:$0xff]
    %v178 = vld [vmem:[#allocation5 + $0x3e8] sm:$0xff]
    %v179 = vld [vmem:[#allocation5 + $0x3f0] sm:$0xff]
    %v180 = vld [vmem:[#allocation5 + $0x3f8] sm:$0xff]
    %v181 = vld [vmem:[#allocation5 + $0x400] sm:$0xff]
    %v182 = vld [vmem:[#allocation5 + $0x408] sm:$0xff]
    %v183 = vld [vmem:[#allocation5 + $0x410] sm:$0xff]
    %v184 = vld [vmem:[#allocation5 + $0x418] sm:$0xff]
    %v185 = vld [vmem:[#allocation5 + $0x420] sm:$0xff]
    %v186 = vld [vmem:[#allocation5 + $0x428] sm:$0xff]
    %v187 = vld [vmem:[#allocation5 + $0x430] sm:$0xff]
    %v188 = vld [vmem:[#allocation5 + $0x438] sm:$0xff]
    %v189 = vld [vmem:[#allocation5 + $0x440] sm:$0xff]
    %v190 = vld [vmem:[#allocation5 + $0x448] sm:$0xff]
    %v191 = vld [vmem:[#allocation5 + $0x450] sm:$0xff]
    %v192 = vld [vmem:[#allocation5 + $0x458] sm:$0xff]
    %v193 = vld [vmem:[#allocation5 + $0x460] sm:$0xff]
    %v194 = vld [vmem:[#allocation5 + $0x468] sm:$0xff]
    %v195 = vld [vmem:[#allocation5 + $0x470] sm:$0xff]
    %v196 = vld [vmem:[#allocation5 + $0x478] sm:$0xff]
    %v197 = vld [vmem:[#allocation5 + $0x480] sm:$0xff]
    %v198 = vld [vmem:[#allocation5 + $0x488] sm:$0xff]
    %v199 = vld [vmem:[#allocation5 + $0x490] sm:$0xff]
    %v200 = vld [vmem:[#allocation5 + $0x498] sm:$0xff]
    %v201 = vld [vmem:[#allocation5 + $0x4a0] sm:$0xff]
    %v202 = vld [vmem:[#allocation5 + $0x4a8] sm:$0xff]
    %v203 = vld [vmem:[#allocation5 + $0x4b0] sm:$0xff]
    %v204 = vld [vmem:[#allocation5 + $0x4b8] sm:$0xff]
    %v205 = vld [vmem:[#allocation5 + $0x4c0] sm:$0xff]
    %v206 = vld [vmem:[#allocation5 + $0x4c8] sm:$0xff]
    %v207 = vld [vmem:[#allocation5 + $0x4d0] sm:$0xff]
    %v208 = vld [vmem:[#allocation5 + $0x4d8] sm:$0xff]
    %v209 = vld [vmem:[#allocation5 + $0x4e0] sm:$0xff]
    %v210 = vld [vmem:[#allocation5 + $0x4e8] sm:$0xff]
    %v211 = vld [vmem:[#allocation5 + $0x4f0] sm:$0xff]
    %v212 = vld [vmem:[#allocation5 + $0x4f8] sm:$0xff]
    %v213 = vld [vmem:[#allocation5 + $0x500] sm:$0xff]
    %v214 = vld [vmem:[#allocation5 + $0x508] sm:$0xff]
    %v215 = vld [vmem:[#allocation5 + $0x510] sm:$0xff]
    %v216 = vld [vmem:[#allocation5 + $0x518] sm:$0xff]
    %v217 = vld [vmem:[#allocation5 + $0x520] sm:$0xff]
    %v218 = vld [vmem:[#allocation5 + $0x528] sm:$0xff]
    %v219 = vld [vmem:[#allocation5 + $0x530] sm:$0xff]
    %v220 = vld [vmem:[#allocation5 + $0x538] sm:$0xff]
    %v221 = vld [vmem:[#allocation5 + $0x540] sm:$0xff]
    %v222 = vld [vmem:[#allocation5 + $0x548] sm:$0xff]
    %v223 = vld [vmem:[#allocation5 + $0x550] sm:$0xff]
    %v224 = vld [vmem:[#allocation5 + $0x558] sm:$0xff]
    %v225 = vld [vmem:[#allocation5 + $0x560] sm:$0xff]
    %v226 = vld [vmem:[#allocation5 + $0x568] sm:$0xff]
    %v227 = vld [vmem:[#allocation5 + $0x570] sm:$0xff]
    %v228 = vld [vmem:[#allocation5 + $0x578] sm:$0xff]
    %v229 = vld [vmem:[#allocation5 + $0x580] sm:$0xff]
    %v230 = vld [vmem:[#allocation5 + $0x588] sm:$0xff]
    %v231 = vld [vmem:[#allocation5 + $0x590] sm:$0xff]
    %v232 = vld [vmem:[#allocation5 + $0x598] sm:$0xff]
    %v233 = vld [vmem:[#allocation5 + $0x5a0] sm:$0xff]
    %v234 = vld [vmem:[#allocation5 + $0x5a8] sm:$0xff]
    %v235 = vld [vmem:[#allocation5 + $0x5b0] sm:$0xff]
    %v236 = vld [vmem:[#allocation5 + $0x5b8] sm:$0xff]
    %v237 = vld [vmem:[#allocation5 + $0x5c0] sm:$0xff]
    %v238 = vld [vmem:[#allocation5 + $0x5c8] sm:$0xff]
    %v239 = vld [vmem:[#allocation5 + $0x5d0] sm:$0xff]
    %v240 = vld [vmem:[#allocation5 + $0x5d8] sm:$0xff]
    %v241 = vld [vmem:[#allocation5 + $0x5e0] sm:$0xff]
    %v242 = vld [vmem:[#allocation5 + $0x5e8] sm:$0xff]
    %v243 = vld [vmem:[#allocation5 + $0x5f0] sm:$0xff]
    %v244 = vld [vmem:[#allocation5 + $0x5f8] sm:$0xff]
    %v245 = vld [vmem:[#allocation5 + $0x600] sm:$0xff]
    %v246 = vld [vmem:[#allocation5 + $0x608] sm:$0xff]
    %v247 = vld [vmem:[#allocation5 + $0x610] sm:$0xff]
    %v248 = vld [vmem:[#allocation5 + $0x618] sm:$0xff]
    %v249 = vld [vmem:[#allocation5 + $0x620] sm:$0xff]
    %v250 = vld [vmem:[#allocation5 + $0x628] sm:$0xff]
    %v251 = vld [vmem:[#allocation5 + $0x630] sm:$0xff]
    %v252 = vld [vmem:[#allocation5 + $0x638] sm:$0xff]
    %v253 = vld [vmem:[#allocation5 + $0x640] sm:$0xff]
    %v254 = vld [vmem:[#allocation5 + $0x648] sm:$0xff]
    %v255 = vld [vmem:[#allocation5 + $0x650] sm:$0xff]
    %v256 = vld [vmem:[#allocation5 + $0x658] sm:$0xff]
    %v257 = vld [vmem:[#allocation5 + $0x660] sm:$0xff]
    %v258 = vld [vmem:[#allocation5 + $0x668] sm:$0xff]
    %v259 = vld [vmem:[#allocation5 + $0x670] sm:$0xff]
    %v260 = vld [vmem:[#allocation5 + $0x678] sm:$0xff]
    %v261 = vld [vmem:[#allocation5 + $0x680] sm:$0xff]
    %v262 = vld [vmem:[#allocation5 + $0x688] sm:$0xff]
    %v263 = vld [vmem:[#allocation5 + $0x690] sm:$0xff]
    %v264 = vld [vmem:[#allocation5 + $0x698] sm:$0xff]
    %v265 = vld [vmem:[#allocation5 + $0x6a0] sm:$0xff]
    %v266 = vld [vmem:[#allocation5 + $0x6a8] sm:$0xff]
    %v267 = vld [vmem:[#allocation5 + $0x6b0] sm:$0xff]
    %v268 = vld [vmem:[#allocation5 + $0x6b8] sm:$0xff]
    %v269 = vld [vmem:[#allocation5 + $0x6c0] sm:$0xff]
    %v270 = vld [vmem:[#allocation5 + $0x6c8] sm:$0xff]
    %v271 = vld [vmem:[#allocation5 + $0x6d0] sm:$0xff]
    %v272 = vld [vmem:[#allocation5 + $0x6d8] sm:$0xff]
    %v273 = vld [vmem:[#allocation5 + $0x6e0] sm:$0xff]
    %v274 = vld [vmem:[#allocation5 + $0x6e8] sm:$0xff]
    %v275 = vld [vmem:[#allocation5 + $0x6f0] sm:$0xff]
    %v276 = vld [vmem:[#allocation5 + $0x6f8] sm:$0xff]
    %v277 = vld [vmem:[#allocation5 + $0x700] sm:$0xff]
    %v278 = vld [vmem:[#allocation5 + $0x708] sm:$0xff]
    %v279 = vld [vmem:[#allocation5 + $0x710] sm:$0xff]
    %v280 = vld [vmem:[#allocation5 + $0x718] sm:$0xff]
    %v281 = vld [vmem:[#allocation5 + $0x720] sm:$0xff]
    %v282 = vld [vmem:[#allocation5 + $0x728] sm:$0xff]
    %v283 = vld [vmem:[#allocation5 + $0x730] sm:$0xff]
    %v284 = vld [vmem:[#allocation5 + $0x738] sm:$0xff]
    %v285 = vld [vmem:[#allocation5 + $0x740] sm:$0xff]
    %v286 = vld [vmem:[#allocation5 + $0x748] sm:$0xff]
    %v287 = vld [vmem:[#allocation5 + $0x750] sm:$0xff]
    %v288 = vld [vmem:[#allocation5 + $0x758] sm:$0xff]
    %v289 = vld [vmem:[#allocation5 + $0x760] sm:$0xff]
    %v290 = vld [vmem:[#allocation5 + $0x768] sm:$0xff]
    %v291 = vld [vmem:[#allocation5 + $0x770] sm:$0xff]
    %v292 = vld [vmem:[#allocation5 + $0x778] sm:$0xff]
    %v293 = vld [vmem:[#allocation5 + $0x780] sm:$0xff]
    %v294 = vld [vmem:[#allocation5 + $0x788] sm:$0xff]
    %v295 = vld [vmem:[#allocation5 + $0x790] sm:$0xff]
    %v296 = vld [vmem:[#allocation5 + $0x798] sm:$0xff]
    %v297 = vld [vmem:[#allocation5 + $0x7a0] sm:$0xff]
    %v298 = vld [vmem:[#allocation5 + $0x7a8] sm:$0xff]
    %v299 = vld [vmem:[#allocation5 + $0x7b0] sm:$0xff]
    %v300 = vld [vmem:[#allocation5 + $0x7b8] sm:$0xff]
    %v301 = vld [vmem:[#allocation5 + $0x7c0] sm:$0xff]
    %v302 = vld [vmem:[#allocation5 + $0x7c8] sm:$0xff]
    %v303 = vld [vmem:[#allocation5 + $0x7d0] sm:$0xff]
    %v304 = vld [vmem:[#allocation5 + $0x7d8] sm:$0xff]
    %v305 = vld [vmem:[#allocation5 + $0x7e0] sm:$0xff]
    %v306 = vld [vmem:[#allocation5 + $0x7e8] sm:$0xff]
    %v307 = vld [vmem:[#allocation5 + $0x7f0] sm:$0xff]
    %v308 = vld [vmem:[#allocation5 + $0x7f8] sm:$0xff]
    %v309 = vld [vmem:[#allocation7] sm:$0xf]
    %v311 = vlaneseq
    %v312 = vshrl.u32 %v311, 7
    %v313 = vsub.s32 0, %v312
    %v314 = vrot.slane %v309, %v313
    %v315 = vlaneseq
    %v316 = vshrl.u32 %v315, 7
    %v317 = vsub.s32 1, %v316
    %v318 = vrot.slane %v309, %v317
    %v319 = vlaneseq
    %v320 = vshrl.u32 %v319, 7
    %v321 = vsub.s32 2, %v320
    %v322 = vrot.slane %v309, %v321
    %v323 = vlaneseq
    %v324 = vshrl.u32 %v323, 7
    %v325 = vsub.s32 3, %v324
    %v326 = vrot.slane %v309, %v325
    %v332 = vcombine.high %v52, %v52
    %v334 = vunpack.c.l.s4 1966171168
    %v335 = vunpack.c.0.s8 %v334
    %v336 = vlaneseq
    %v337 = vshrl.u32 %v336, 7
    %v338 = vsub.s32 %v335, %v337
    %v339 = vrot.slane %v52, %v338
    %v341 = vunpack.c.l.s4 1966171168
    %v342 = vunpack.c.0.s8 %v341
    %v343 = vlaneseq
    %v344 = vshrl.u32 %v343, 7
    %v345 = vsub.s32 %v342, %v344
    %v346 = vrot.slane %v332, %v345
    %v347 = vcombine.high %v339, %v339
    %v348 = vcombine.high %v346, %v346
    %v350 = vunpack.c.l.s4 1966171168
    %v351 = vunpack.c.0.s8 %v350
    %v352 = vlaneseq
    %v353 = vshrl.u32 %v352, 7
    %v354 = vsub.s32 %v351, %v353
    %v355 = vrot.slane %v339, %v354
    %v357 = vunpack.c.l.s4 1966171168
    %v358 = vunpack.c.0.s8 %v357
    %v359 = vlaneseq
    %v360 = vshrl.u32 %v359, 7
    %v361 = vsub.s32 %v358, %v360
    %v362 = vrot.slane %v346, %v361
    %v364 = vunpack.c.l.s4 1966171168
    %v365 = vunpack.c.0.s8 %v364
    %v366 = vlaneseq
    %v367 = vshrl.u32 %v366, 7
    %v368 = vsub.s32 %v365, %v367
    %v369 = vrot.slane %v347, %v368
    %v371 = vunpack.c.l.s4 1966171168
    %v372 = vunpack.c.0.s8 %v371
    %v373 = vlaneseq
    %v374 = vshrl.u32 %v373, 7
    %v375 = vsub.s32 %v372, %v374
    %v376 = vrot.slane %v348, %v375
    %v377 = vcombine.high %v355, %v355
    %v378 = vcombine.high %v362, %v362
    %v379 = vcombine.high %v369, %v369
    %v380 = vcombine.high %v376, %v376
    %v645 = vunpack.c.l.b16 %v53
    %v646 = vunpack.c.h.b16 %v53
    %v647 = vunpack.c.l.b16 %v54
    %v648 = vunpack.c.h.b16 %v54
    %v649 = vunpack.c.l.b16 %v55
    %v650 = vunpack.c.h.b16 %v55
    %v651 = vunpack.c.l.b16 %v56
    %v652 = vunpack.c.h.b16 %v56
    %v653 = vunpack.c.l.b16 %v57
    %v654 = vunpack.c.h.b16 %v57
    %v655 = vunpack.c.l.b16 %v58
    %v656 = vunpack.c.h.b16 %v58
    %v657 = vunpack.c.l.b16 %v59
    %v658 = vunpack.c.h.b16 %v59
    %v659 = vunpack.c.l.b16 %v60
    %v660 = vunpack.c.h.b16 %v60
    %v661 = vunpack.c.l.b16 %v61
    %v662 = vunpack.c.h.b16 %v61
    %v663 = vunpack.c.l.b16 %v62
    %v664 = vunpack.c.h.b16 %v62
    %v665 = vunpack.c.l.b16 %v63
    %v666 = vunpack.c.h.b16 %v63
    %v667 = vunpack.c.l.b16 %v64
    %v668 = vunpack.c.h.b16 %v64
    %v669 = vunpack.c.l.b16 %v65
    %v670 = vunpack.c.h.b16 %v65
    %v671 = vunpack.c.l.b16 %v66
    %v672 = vunpack.c.h.b16 %v66
    %v673 = vunpack.c.l.b16 %v67
    %v674 = vunpack.c.h.b16 %v67
    %v675 = vunpack.c.l.b16 %v68
    %v676 = vunpack.c.h.b16 %v68
    %v677 = vunpack.c.l.b16 %v69
    %v678 = vunpack.c.h.b16 %v69
    %v679 = vunpack.c.l.b16 %v70
    %v680 = vunpack.c.h.b16 %v70
    %v681 = vunpack.c.l.b16 %v71
    %v682 = vunpack.c.h.b16 %v71
    %v683 = vunpack.c.l.b16 %v72
    %v684 = vunpack.c.h.b16 %v72
    %v685 = vunpack.c.l.b16 %v73
    %v686 = vunpack.c.h.b16 %v73
    %v687 = vunpack.c.l.b16 %v74
    %v688 = vunpack.c.h.b16 %v74
    %v689 = vunpack.c.l.b16 %v75
    %v690 = vunpack.c.h.b16 %v75
    %v691 = vunpack.c.l.b16 %v76
    %v692 = vunpack.c.h.b16 %v76
    %v693 = vunpack.c.l.b16 %v77
    %v694 = vunpack.c.h.b16 %v77
    %v695 = vunpack.c.l.b16 %v78
    %v696 = vunpack.c.h.b16 %v78
    %v697 = vunpack.c.l.b16 %v79
    %v698 = vunpack.c.h.b16 %v79
    %v699 = vunpack.c.l.b16 %v80
    %v700 = vunpack.c.h.b16 %v80
    %v701 = vunpack.c.l.b16 %v81
    %v702 = vunpack.c.h.b16 %v81
    %v703 = vunpack.c.l.b16 %v82
    %v704 = vunpack.c.h.b16 %v82
    %v705 = vunpack.c.l.b16 %v83
    %v706 = vunpack.c.h.b16 %v83
    %v707 = vunpack.c.l.b16 %v84
    %v708 = vunpack.c.h.b16 %v84
    %v709 = vunpack.c.l.b16 %v85
    %v710 = vunpack.c.h.b16 %v85
    %v711 = vunpack.c.l.b16 %v86
    %v712 = vunpack.c.h.b16 %v86
    %v713 = vunpack.c.l.b16 %v87
    %v714 = vunpack.c.h.b16 %v87
    %v715 = vunpack.c.l.b16 %v88
    %v716 = vunpack.c.h.b16 %v88
    %v717 = vunpack.c.l.b16 %v89
    %v718 = vunpack.c.h.b16 %v89
    %v719 = vunpack.c.l.b16 %v90
    %v720 = vunpack.c.h.b16 %v90
    %v721 = vunpack.c.l.b16 %v91
    %v722 = vunpack.c.h.b16 %v91
    %v723 = vunpack.c.l.b16 %v92
    %v724 = vunpack.c.h.b16 %v92
    %v725 = vunpack.c.l.b16 %v93
    %v726 = vunpack.c.h.b16 %v93
    %v727 = vunpack.c.l.b16 %v94
    %v728 = vunpack.c.h.b16 %v94
    %v729 = vunpack.c.l.b16 %v95
    %v730 = vunpack.c.h.b16 %v95
    %v731 = vunpack.c.l.b16 %v96
    %v732 = vunpack.c.h.b16 %v96
    %v733 = vunpack.c.l.b16 %v97
    %v734 = vunpack.c.h.b16 %v97
    %v735 = vunpack.c.l.b16 %v98
    %v736 = vunpack.c.h.b16 %v98
    %v737 = vunpack.c.l.b16 %v99
    %v738 = vunpack.c.h.b16 %v99
    %v739 = vunpack.c.l.b16 %v100
    %v740 = vunpack.c.h.b16 %v100
    %v741 = vunpack.c.l.b16 %v101
    %v742 = vunpack.c.h.b16 %v101
    %v743 = vunpack.c.l.b16 %v102
    %v744 = vunpack.c.h.b16 %v102
    %v745 = vunpack.c.l.b16 %v103
    %v746 = vunpack.c.h.b16 %v103
    %v747 = vunpack.c.l.b16 %v104
    %v748 = vunpack.c.h.b16 %v104
    %v749 = vunpack.c.l.b16 %v105
    %v750 = vunpack.c.h.b16 %v105
    %v751 = vunpack.c.l.b16 %v106
    %v752 = vunpack.c.h.b16 %v106
    %v753 = vunpack.c.l.b16 %v107
    %v754 = vunpack.c.h.b16 %v107
    %v755 = vunpack.c.l.b16 %v108
    %v756 = vunpack.c.h.b16 %v108
    %v757 = vunpack.c.l.b16 %v109
    %v758 = vunpack.c.h.b16 %v109
    %v759 = vunpack.c.l.b16 %v110
    %v760 = vunpack.c.h.b16 %v110
    %v761 = vunpack.c.l.b16 %v111
    %v762 = vunpack.c.h.b16 %v111
    %v763 = vunpack.c.l.b16 %v112
    %v764 = vunpack.c.h.b16 %v112
    %v765 = vunpack.c.l.b16 %v113
    %v766 = vunpack.c.h.b16 %v113
    %v767 = vunpack.c.l.b16 %v114
    %v768 = vunpack.c.h.b16 %v114
    %v769 = vunpack.c.l.b16 %v115
    %v770 = vunpack.c.h.b16 %v115
    %v771 = vunpack.c.l.b16 %v116
    %v772 = vunpack.c.h.b16 %v116
    %v773 = vunpack.c.l.b16 %v117
    %v774 = vunpack.c.h.b16 %v117
    %v775 = vunpack.c.l.b16 %v118
    %v776 = vunpack.c.h.b16 %v118
    %v777 = vunpack.c.l.b16 %v119
    %v778 = vunpack.c.h.b16 %v119
    %v779 = vunpack.c.l.b16 %v120
    %v780 = vunpack.c.h.b16 %v120
    %v781 = vunpack.c.l.b16 %v121
    %v782 = vunpack.c.h.b16 %v121
    %v783 = vunpack.c.l.b16 %v122
    %v784 = vunpack.c.h.b16 %v122
    %v785 = vunpack.c.l.b16 %v123
    %v786 = vunpack.c.h.b16 %v123
    %v787 = vunpack.c.l.b16 %v124
    %v788 = vunpack.c.h.b16 %v124
    %v789 = vunpack.c.l.b16 %v125
    %v790 = vunpack.c.h.b16 %v125
    %v791 = vunpack.c.l.b16 %v126
    %v792 = vunpack.c.h.b16 %v126
    %v793 = vunpack.c.l.b16 %v127
    %v794 = vunpack.c.h.b16 %v127
    %v795 = vunpack.c.l.b16 %v128
    %v796 = vunpack.c.h.b16 %v128
    %v797 = vunpack.c.l.b16 %v129
    %v798 = vunpack.c.h.b16 %v129
    %v799 = vunpack.c.l.b16 %v130
    %v800 = vunpack.c.h.b16 %v130
    %v801 = vunpack.c.l.b16 %v131
    %v802 = vunpack.c.h.b16 %v131
    %v803 = vunpack.c.l.b16 %v132
    %v804 = vunpack.c.h.b16 %v132
    %v805 = vunpack.c.l.b16 %v133
    %v806 = vunpack.c.h.b16 %v133
    %v807 = vunpack.c.l.b16 %v134
    %v808 = vunpack.c.h.b16 %v134
    %v809 = vunpack.c.l.b16 %v135
    %v810 = vunpack.c.h.b16 %v135
    %v811 = vunpack.c.l.b16 %v136
    %v812 = vunpack.c.h.b16 %v136
    %v813 = vunpack.c.l.b16 %v137
    %v814 = vunpack.c.h.b16 %v137
    %v815 = vunpack.c.l.b16 %v138
    %v816 = vunpack.c.h.b16 %v138
    %v817 = vunpack.c.l.b16 %v139
    %v818 = vunpack.c.h.b16 %v139
    %v819 = vunpack.c.l.b16 %v140
    %v820 = vunpack.c.h.b16 %v140
    %v821 = vunpack.c.l.b16 %v141
    %v822 = vunpack.c.h.b16 %v141
    %v823 = vunpack.c.l.b16 %v142
    %v824 = vunpack.c.h.b16 %v142
    %v825 = vunpack.c.l.b16 %v143
    %v826 = vunpack.c.h.b16 %v143
    %v827 = vunpack.c.l.b16 %v144
    %v828 = vunpack.c.h.b16 %v144
    %v829 = vunpack.c.l.b16 %v145
    %v830 = vunpack.c.h.b16 %v145
    %v831 = vunpack.c.l.b16 %v146
    %v832 = vunpack.c.h.b16 %v146
    %v833 = vunpack.c.l.b16 %v147
    %v834 = vunpack.c.h.b16 %v147
    %v835 = vunpack.c.l.b16 %v148
    %v836 = vunpack.c.h.b16 %v148
    %v837 = vunpack.c.l.b16 %v149
    %v838 = vunpack.c.h.b16 %v149
    %v839 = vunpack.c.l.b16 %v150
    %v840 = vunpack.c.h.b16 %v150
    %v841 = vunpack.c.l.b16 %v151
    %v842 = vunpack.c.h.b16 %v151
    %v843 = vunpack.c.l.b16 %v152
    %v844 = vunpack.c.h.b16 %v152
    %v845 = vunpack.c.l.b16 %v153
    %v846 = vunpack.c.h.b16 %v153
    %v847 = vunpack.c.l.b16 %v154
    %v848 = vunpack.c.h.b16 %v154
    %v849 = vunpack.c.l.b16 %v155
    %v850 = vunpack.c.h.b16 %v155
    %v851 = vunpack.c.l.b16 %v156
    %v852 = vunpack.c.h.b16 %v156
    %v853 = vunpack.c.l.b16 %v157
    %v854 = vunpack.c.h.b16 %v157
    %v855 = vunpack.c.l.b16 %v158
    %v856 = vunpack.c.h.b16 %v158
    %v857 = vunpack.c.l.b16 %v159
    %v858 = vunpack.c.h.b16 %v159
    %v859 = vunpack.c.l.b16 %v160
    %v860 = vunpack.c.h.b16 %v160
    %v861 = vunpack.c.l.b16 %v161
    %v862 = vunpack.c.h.b16 %v161
    %v863 = vunpack.c.l.b16 %v162
    %v864 = vunpack.c.h.b16 %v162
    %v865 = vunpack.c.l.b16 %v163
    %v866 = vunpack.c.h.b16 %v163
    %v867 = vunpack.c.l.b16 %v164
    %v868 = vunpack.c.h.b16 %v164
    %v869 = vunpack.c.l.b16 %v165
    %v870 = vunpack.c.h.b16 %v165
    %v871 = vunpack.c.l.b16 %v166
    %v872 = vunpack.c.h.b16 %v166
    %v873 = vunpack.c.l.b16 %v167
    %v874 = vunpack.c.h.b16 %v167
    %v875 = vunpack.c.l.b16 %v168
    %v876 = vunpack.c.h.b16 %v168
    %v877 = vunpack.c.l.b16 %v169
    %v878 = vunpack.c.h.b16 %v169
    %v879 = vunpack.c.l.b16 %v170
    %v880 = vunpack.c.h.b16 %v170
    %v881 = vunpack.c.l.b16 %v171
    %v882 = vunpack.c.h.b16 %v171
    %v883 = vunpack.c.l.b16 %v172
    %v884 = vunpack.c.h.b16 %v172
    %v885 = vunpack.c.l.b16 %v173
    %v886 = vunpack.c.h.b16 %v173
    %v887 = vunpack.c.l.b16 %v174
    %v888 = vunpack.c.h.b16 %v174
    %v889 = vunpack.c.l.b16 %v175
    %v890 = vunpack.c.h.b16 %v175
    %v891 = vunpack.c.l.b16 %v176
    %v892 = vunpack.c.h.b16 %v176
    %v893 = vunpack.c.l.b16 %v177
    %v894 = vunpack.c.h.b16 %v177
    %v895 = vunpack.c.l.b16 %v178
    %v896 = vunpack.c.h.b16 %v178
    %v897 = vunpack.c.l.b16 %v179
    %v898 = vunpack.c.h.b16 %v179
    %v899 = vunpack.c.l.b16 %v180
    %v900 = vunpack.c.h.b16 %v180
    %v901 = vunpack.c.l.b16 %v181
    %v902 = vunpack.c.h.b16 %v181
    %v903 = vunpack.c.l.b16 %v182
    %v904 = vunpack.c.h.b16 %v182
    %v905 = vunpack.c.l.b16 %v183
    %v906 = vunpack.c.h.b16 %v183
    %v907 = vunpack.c.l.b16 %v184
    %v908 = vunpack.c.h.b16 %v184
    %v909 = vunpack.c.l.b16 %v185
    %v910 = vunpack.c.h.b16 %v185
    %v911 = vunpack.c.l.b16 %v186
    %v912 = vunpack.c.h.b16 %v186
    %v913 = vunpack.c.l.b16 %v187
    %v914 = vunpack.c.h.b16 %v187
    %v915 = vunpack.c.l.b16 %v188
    %v916 = vunpack.c.h.b16 %v188
    %v917 = vunpack.c.l.b16 %v189
    %v918 = vunpack.c.h.b16 %v189
    %v919 = vunpack.c.l.b16 %v190
    %v920 = vunpack.c.h.b16 %v190
    %v921 = vunpack.c.l.b16 %v191
    %v922 = vunpack.c.h.b16 %v191
    %v923 = vunpack.c.l.b16 %v192
    %v924 = vunpack.c.h.b16 %v192
    %v925 = vunpack.c.l.b16 %v193
    %v926 = vunpack.c.h.b16 %v193
    %v927 = vunpack.c.l.b16 %v194
    %v928 = vunpack.c.h.b16 %v194
    %v929 = vunpack.c.l.b16 %v195
    %v930 = vunpack.c.h.b16 %v195
    %v931 = vunpack.c.l.b16 %v196
    %v932 = vunpack.c.h.b16 %v196
    %v933 = vunpack.c.l.b16 %v197
    %v934 = vunpack.c.h.b16 %v197
    %v935 = vunpack.c.l.b16 %v198
    %v936 = vunpack.c.h.b16 %v198
    %v937 = vunpack.c.l.b16 %v199
    %v938 = vunpack.c.h.b16 %v199
    %v939 = vunpack.c.l.b16 %v200
    %v940 = vunpack.c.h.b16 %v200
    %v941 = vunpack.c.l.b16 %v201
    %v942 = vunpack.c.h.b16 %v201
    %v943 = vunpack.c.l.b16 %v202
    %v944 = vunpack.c.h.b16 %v202
    %v945 = vunpack.c.l.b16 %v203
    %v946 = vunpack.c.h.b16 %v203
    %v947 = vunpack.c.l.b16 %v204
    %v948 = vunpack.c.h.b16 %v204
    %v949 = vunpack.c.l.b16 %v205
    %v950 = vunpack.c.h.b16 %v205
    %v951 = vunpack.c.l.b16 %v206
    %v952 = vunpack.c.h.b16 %v206
    %v953 = vunpack.c.l.b16 %v207
    %v954 = vunpack.c.h.b16 %v207
    %v955 = vunpack.c.l.b16 %v208
    %v956 = vunpack.c.h.b16 %v208
    %v957 = vunpack.c.l.b16 %v209
    %v958 = vunpack.c.h.b16 %v209
    %v959 = vunpack.c.l.b16 %v210
    %v960 = vunpack.c.h.b16 %v210
    %v961 = vunpack.c.l.b16 %v211
    %v962 = vunpack.c.h.b16 %v211
    %v963 = vunpack.c.l.b16 %v212
    %v964 = vunpack.c.h.b16 %v212
    %v965 = vunpack.c.l.b16 %v213
    %v966 = vunpack.c.h.b16 %v213
    %v967 = vunpack.c.l.b16 %v214
    %v968 = vunpack.c.h.b16 %v214
    %v969 = vunpack.c.l.b16 %v215
    %v970 = vunpack.c.h.b16 %v215
    %v971 = vunpack.c.l.b16 %v216
    %v972 = vunpack.c.h.b16 %v216
    %v973 = vunpack.c.l.b16 %v217
    %v974 = vunpack.c.h.b16 %v217
    %v975 = vunpack.c.l.b16 %v218
    %v976 = vunpack.c.h.b16 %v218
    %v977 = vunpack.c.l.b16 %v219
    %v978 = vunpack.c.h.b16 %v219
    %v979 = vunpack.c.l.b16 %v220
    %v980 = vunpack.c.h.b16 %v220
    %v981 = vunpack.c.l.b16 %v221
    %v982 = vunpack.c.h.b16 %v221
    %v983 = vunpack.c.l.b16 %v222
    %v984 = vunpack.c.h.b16 %v222
    %v985 = vunpack.c.l.b16 %v223
    %v986 = vunpack.c.h.b16 %v223
    %v987 = vunpack.c.l.b16 %v224
    %v988 = vunpack.c.h.b16 %v224
    %v989 = vunpack.c.l.b16 %v225
    %v990 = vunpack.c.h.b16 %v225
    %v991 = vunpack.c.l.b16 %v226
    %v992 = vunpack.c.h.b16 %v226
    %v993 = vunpack.c.l.b16 %v227
    %v994 = vunpack.c.h.b16 %v227
    %v995 = vunpack.c.l.b16 %v228
    %v996 = vunpack.c.h.b16 %v228
    %v997 = vunpack.c.l.b16 %v229
    %v998 = vunpack.c.h.b16 %v229
    %v999 = vunpack.c.l.b16 %v230
    %v1000 = vunpack.c.h.b16 %v230
    %v1001 = vunpack.c.l.b16 %v231
    %v1002 = vunpack.c.h.b16 %v231
    %v1003 = vunpack.c.l.b16 %v232
    %v1004 = vunpack.c.h.b16 %v232
    %v1005 = vunpack.c.l.b16 %v233
    %v1006 = vunpack.c.h.b16 %v233
    %v1007 = vunpack.c.l.b16 %v234
    %v1008 = vunpack.c.h.b16 %v234
    %v1009 = vunpack.c.l.b16 %v235
    %v1010 = vunpack.c.h.b16 %v235
    %v1011 = vunpack.c.l.b16 %v236
    %v1012 = vunpack.c.h.b16 %v236
    %v1013 = vunpack.c.l.b16 %v237
    %v1014 = vunpack.c.h.b16 %v237
    %v1015 = vunpack.c.l.b16 %v238
    %v1016 = vunpack.c.h.b16 %v238
    %v1017 = vunpack.c.l.b16 %v239
    %v1018 = vunpack.c.h.b16 %v239
    %v1019 = vunpack.c.l.b16 %v240
    %v1020 = vunpack.c.h.b16 %v240
    %v1021 = vunpack.c.l.b16 %v241
    %v1022 = vunpack.c.h.b16 %v241
    %v1023 = vunpack.c.l.b16 %v242
    %v1024 = vunpack.c.h.b16 %v242
    %v1025 = vunpack.c.l.b16 %v243
    %v1026 = vunpack.c.h.b16 %v243
    %v1027 = vunpack.c.l.b16 %v244
    %v1028 = vunpack.c.h.b16 %v244
    %v1029 = vunpack.c.l.b16 %v245
    %v1030 = vunpack.c.h.b16 %v245
    %v1031 = vunpack.c.l.b16 %v246
    %v1032 = vunpack.c.h.b16 %v246
    %v1033 = vunpack.c.l.b16 %v247
    %v1034 = vunpack.c.h.b16 %v247
    %v1035 = vunpack.c.l.b16 %v248
    %v1036 = vunpack.c.h.b16 %v248
    %v1037 = vunpack.c.l.b16 %v249
    %v1038 = vunpack.c.h.b16 %v249
    %v1039 = vunpack.c.l.b16 %v250
    %v1040 = vunpack.c.h.b16 %v250
    %v1041 = vunpack.c.l.b16 %v251
    %v1042 = vunpack.c.h.b16 %v251
    %v1043 = vunpack.c.l.b16 %v252
    %v1044 = vunpack.c.h.b16 %v252
    %v1045 = vunpack.c.l.b16 %v253
    %v1046 = vunpack.c.h.b16 %v253
    %v1047 = vunpack.c.l.b16 %v254
    %v1048 = vunpack.c.h.b16 %v254
    %v1049 = vunpack.c.l.b16 %v255
    %v1050 = vunpack.c.h.b16 %v255
    %v1051 = vunpack.c.l.b16 %v256
    %v1052 = vunpack.c.h.b16 %v256
    %v1053 = vunpack.c.l.b16 %v257
    %v1054 = vunpack.c.h.b16 %v257
    %v1055 = vunpack.c.l.b16 %v258
    %v1056 = vunpack.c.h.b16 %v258
    %v1057 = vunpack.c.l.b16 %v259
    %v1058 = vunpack.c.h.b16 %v259
    %v1059 = vunpack.c.l.b16 %v260
    %v1060 = vunpack.c.h.b16 %v260
    %v1061 = vunpack.c.l.b16 %v261
    %v1062 = vunpack.c.h.b16 %v261
    %v1063 = vunpack.c.l.b16 %v262
    %v1064 = vunpack.c.h.b16 %v262
    %v1065 = vunpack.c.l.b16 %v263
    %v1066 = vunpack.c.h.b16 %v263
    %v1067 = vunpack.c.l.b16 %v264
    %v1068 = vunpack.c.h.b16 %v264
    %v1069 = vunpack.c.l.b16 %v265
    %v1070 = vunpack.c.h.b16 %v265
    %v1071 = vunpack.c.l.b16 %v266
    %v1072 = vunpack.c.h.b16 %v266
    %v1073 = vunpack.c.l.b16 %v267
    %v1074 = vunpack.c.h.b16 %v267
    %v1075 = vunpack.c.l.b16 %v268
    %v1076 = vunpack.c.h.b16 %v268
    %v1077 = vunpack.c.l.b16 %v269
    %v1078 = vunpack.c.h.b16 %v269
    %v1079 = vunpack.c.l.b16 %v270
    %v1080 = vunpack.c.h.b16 %v270
    %v1081 = vunpack.c.l.b16 %v271
    %v1082 = vunpack.c.h.b16 %v271
    %v1083 = vunpack.c.l.b16 %v272
    %v1084 = vunpack.c.h.b16 %v272
    %v1085 = vunpack.c.l.b16 %v273
    %v1086 = vunpack.c.h.b16 %v273
    %v1087 = vunpack.c.l.b16 %v274
    %v1088 = vunpack.c.h.b16 %v274
    %v1089 = vunpack.c.l.b16 %v275
    %v1090 = vunpack.c.h.b16 %v275
    %v1091 = vunpack.c.l.b16 %v276
    %v1092 = vunpack.c.h.b16 %v276
    %v1093 = vunpack.c.l.b16 %v277
    %v1094 = vunpack.c.h.b16 %v277
    %v1095 = vunpack.c.l.b16 %v278
    %v1096 = vunpack.c.h.b16 %v278
    %v1097 = vunpack.c.l.b16 %v279
    %v1098 = vunpack.c.h.b16 %v279
    %v1099 = vunpack.c.l.b16 %v280
    %v1100 = vunpack.c.h.b16 %v280
    %v1101 = vunpack.c.l.b16 %v281
    %v1102 = vunpack.c.h.b16 %v281
    %v1103 = vunpack.c.l.b16 %v282
    %v1104 = vunpack.c.h.b16 %v282
    %v1105 = vunpack.c.l.b16 %v283
    %v1106 = vunpack.c.h.b16 %v283
    %v1107 = vunpack.c.l.b16 %v284
    %v1108 = vunpack.c.h.b16 %v284
    %v1109 = vunpack.c.l.b16 %v285
    %v1110 = vunpack.c.h.b16 %v285
    %v1111 = vunpack.c.l.b16 %v286
    %v1112 = vunpack.c.h.b16 %v286
    %v1113 = vunpack.c.l.b16 %v287
    %v1114 = vunpack.c.h.b16 %v287
    %v1115 = vunpack.c.l.b16 %v288
    %v1116 = vunpack.c.h.b16 %v288
    %v1117 = vunpack.c.l.b16 %v289
    %v1118 = vunpack.c.h.b16 %v289
    %v1119 = vunpack.c.l.b16 %v290
    %v1120 = vunpack.c.h.b16 %v290
    %v1121 = vunpack.c.l.b16 %v291
    %v1122 = vunpack.c.h.b16 %v291
    %v1123 = vunpack.c.l.b16 %v292
    %v1124 = vunpack.c.h.b16 %v292
    %v1125 = vunpack.c.l.b16 %v293
    %v1126 = vunpack.c.h.b16 %v293
    %v1127 = vunpack.c.l.b16 %v294
    %v1128 = vunpack.c.h.b16 %v294
    %v1129 = vunpack.c.l.b16 %v295
    %v1130 = vunpack.c.h.b16 %v295
    %v1131 = vunpack.c.l.b16 %v296
    %v1132 = vunpack.c.h.b16 %v296
    %v1133 = vunpack.c.l.b16 %v297
    %v1134 = vunpack.c.h.b16 %v297
    %v1135 = vunpack.c.l.b16 %v298
    %v1136 = vunpack.c.h.b16 %v298
    %v1137 = vunpack.c.l.b16 %v299
    %v1138 = vunpack.c.h.b16 %v299
    %v1139 = vunpack.c.l.b16 %v300
    %v1140 = vunpack.c.h.b16 %v300
    %v1141 = vunpack.c.l.b16 %v301
    %v1142 = vunpack.c.h.b16 %v301
    %v1143 = vunpack.c.l.b16 %v302
    %v1144 = vunpack.c.h.b16 %v302
    %v1145 = vunpack.c.l.b16 %v303
    %v1146 = vunpack.c.h.b16 %v303
    %v1147 = vunpack.c.l.b16 %v304
    %v1148 = vunpack.c.h.b16 %v304
    %v1149 = vunpack.c.l.b16 %v305
    %v1150 = vunpack.c.h.b16 %v305
    %v1151 = vunpack.c.l.b16 %v306
    %v1152 = vunpack.c.h.b16 %v306
    %v1153 = vunpack.c.l.b16 %v307
    %v1154 = vunpack.c.h.b16 %v307
    %v1155 = vunpack.c.l.b16 %v308
    %v1156 = vunpack.c.h.b16 %v308
    %v1157 = vpack.c.b16 %v649, %v645
    %v1158 = vpack.c.b16 %v650, %v646
    %v1159 = vpack.c.b16 %v651, %v647
    %v1160 = vpack.c.b16 %v652, %v648
    %v1161 = vpack.c.b16 %v657, %v653
    %v1162 = vpack.c.b16 %v658, %v654
    %v1163 = vpack.c.b16 %v659, %v655
    %v1164 = vpack.c.b16 %v660, %v656
    %v1165 = vpack.c.b16 %v665, %v661
    %v1166 = vpack.c.b16 %v666, %v662
    %v1167 = vpack.c.b16 %v667, %v663
    %v1168 = vpack.c.b16 %v668, %v664
    %v1169 = vpack.c.b16 %v673, %v669
    %v1170 = vpack.c.b16 %v674, %v670
    %v1171 = vpack.c.b16 %v675, %v671
    %v1172 = vpack.c.b16 %v676, %v672
    %v1173 = vpack.c.b16 %v681, %v677
    %v1174 = vpack.c.b16 %v682, %v678
    %v1175 = vpack.c.b16 %v683, %v679
    %v1176 = vpack.c.b16 %v684, %v680
    %v1177 = vpack.c.b16 %v689, %v685
    %v1178 = vpack.c.b16 %v690, %v686
    %v1179 = vpack.c.b16 %v691, %v687
    %v1180 = vpack.c.b16 %v692, %v688
    %v1181 = vpack.c.b16 %v697, %v693
    %v1182 = vpack.c.b16 %v698, %v694
    %v1183 = vpack.c.b16 %v699, %v695
    %v1184 = vpack.c.b16 %v700, %v696
    %v1185 = vpack.c.b16 %v705, %v701
    %v1186 = vpack.c.b16 %v706, %v702
    %v1187 = vpack.c.b16 %v707, %v703
    %v1188 = vpack.c.b16 %v708, %v704
    %v1189 = vpack.c.b16 %v713, %v709
    %v1190 = vpack.c.b16 %v714, %v710
    %v1191 = vpack.c.b16 %v715, %v711
    %v1192 = vpack.c.b16 %v716, %v712
    %v1193 = vpack.c.b16 %v721, %v717
    %v1194 = vpack.c.b16 %v722, %v718
    %v1195 = vpack.c.b16 %v723, %v719
    %v1196 = vpack.c.b16 %v724, %v720
    %v1197 = vpack.c.b16 %v729, %v725
    %v1198 = vpack.c.b16 %v730, %v726
    %v1199 = vpack.c.b16 %v731, %v727
    %v1200 = vpack.c.b16 %v732, %v728
    %v1201 = vpack.c.b16 %v737, %v733
    %v1202 = vpack.c.b16 %v738, %v734
    %v1203 = vpack.c.b16 %v739, %v735
    %v1204 = vpack.c.b16 %v740, %v736
    %v1205 = vpack.c.b16 %v745, %v741
    %v1206 = vpack.c.b16 %v746, %v742
    %v1207 = vpack.c.b16 %v747, %v743
    %v1208 = vpack.c.b16 %v748, %v744
    %v1209 = vpack.c.b16 %v753, %v749
    %v1210 = vpack.c.b16 %v754, %v750
    %v1211 = vpack.c.b16 %v755, %v751
    %v1212 = vpack.c.b16 %v756, %v752
    %v1213 = vpack.c.b16 %v761, %v757
    %v1214 = vpack.c.b16 %v762, %v758
    %v1215 = vpack.c.b16 %v763, %v759
    %v1216 = vpack.c.b16 %v764, %v760
    %v1217 = vpack.c.b16 %v769, %v765
    %v1218 = vpack.c.b16 %v770, %v766
    %v1219 = vpack.c.b16 %v771, %v767
    %v1220 = vpack.c.b16 %v772, %v768
    %v1221 = vpack.c.b16 %v777, %v773
    %v1222 = vpack.c.b16 %v778, %v774
    %v1223 = vpack.c.b16 %v779, %v775
    %v1224 = vpack.c.b16 %v780, %v776
    %v1225 = vpack.c.b16 %v785, %v781
    %v1226 = vpack.c.b16 %v786, %v782
    %v1227 = vpack.c.b16 %v787, %v783
    %v1228 = vpack.c.b16 %v788, %v784
    %v1229 = vpack.c.b16 %v793, %v789
    %v1230 = vpack.c.b16 %v794, %v790
    %v1231 = vpack.c.b16 %v795, %v791
    %v1232 = vpack.c.b16 %v796, %v792
    %v1233 = vpack.c.b16 %v801, %v797
    %v1234 = vpack.c.b16 %v802, %v798
    %v1235 = vpack.c.b16 %v803, %v799
    %v1236 = vpack.c.b16 %v804, %v800
    %v1237 = vpack.c.b16 %v809, %v805
    %v1238 = vpack.c.b16 %v810, %v806
    %v1239 = vpack.c.b16 %v811, %v807
    %v1240 = vpack.c.b16 %v812, %v808
    %v1241 = vpack.c.b16 %v817, %v813
    %v1242 = vpack.c.b16 %v818, %v814
    %v1243 = vpack.c.b16 %v819, %v815
    %v1244 = vpack.c.b16 %v820, %v816
    %v1245 = vpack.c.b16 %v825, %v821
    %v1246 = vpack.c.b16 %v826, %v822
    %v1247 = vpack.c.b16 %v827, %v823
    %v1248 = vpack.c.b16 %v828, %v824
    %v1249 = vpack.c.b16 %v833, %v829
    %v1250 = vpack.c.b16 %v834, %v830
    %v1251 = vpack.c.b16 %v835, %v831
    %v1252 = vpack.c.b16 %v836, %v832
    %v1253 = vpack.c.b16 %v841, %v837
    %v1254 = vpack.c.b16 %v842, %v838
    %v1255 = vpack.c.b16 %v843, %v839
    %v1256 = vpack.c.b16 %v844, %v840
    %v1257 = vpack.c.b16 %v849, %v845
    %v1258 = vpack.c.b16 %v850, %v846
    %v1259 = vpack.c.b16 %v851, %v847
    %v1260 = vpack.c.b16 %v852, %v848
    %v1261 = vpack.c.b16 %v857, %v853
    %v1262 = vpack.c.b16 %v858, %v854
    %v1263 = vpack.c.b16 %v859, %v855
    %v1264 = vpack.c.b16 %v860, %v856
    %v1265 = vpack.c.b16 %v865, %v861
    %v1266 = vpack.c.b16 %v866, %v862
    %v1267 = vpack.c.b16 %v867, %v863
    %v1268 = vpack.c.b16 %v868, %v864
    %v1269 = vpack.c.b16 %v873, %v869
    %v1270 = vpack.c.b16 %v874, %v870
    %v1271 = vpack.c.b16 %v875, %v871
    %v1272 = vpack.c.b16 %v876, %v872
    %v1273 = vpack.c.b16 %v881, %v877
    %v1274 = vpack.c.b16 %v882, %v878
    %v1275 = vpack.c.b16 %v883, %v879
    %v1276 = vpack.c.b16 %v884, %v880
    %v1277 = vpack.c.b16 %v889, %v885
    %v1278 = vpack.c.b16 %v890, %v886
    %v1279 = vpack.c.b16 %v891, %v887
    %v1280 = vpack.c.b16 %v892, %v888
    %v1281 = vpack.c.b16 %v897, %v893
    %v1282 = vpack.c.b16 %v898, %v894
    %v1283 = vpack.c.b16 %v899, %v895
    %v1284 = vpack.c.b16 %v900, %v896
    %v1285 = vpack.c.b16 %v905, %v901
    %v1286 = vpack.c.b16 %v906, %v902
    %v1287 = vpack.c.b16 %v907, %v903
    %v1288 = vpack.c.b16 %v908, %v904
    %v1289 = vpack.c.b16 %v913, %v909
    %v1290 = vpack.c.b16 %v914, %v910
    %v1291 = vpack.c.b16 %v915, %v911
    %v1292 = vpack.c.b16 %v916, %v912
    %v1293 = vpack.c.b16 %v921, %v917
    %v1294 = vpack.c.b16 %v922, %v918
    %v1295 = vpack.c.b16 %v923, %v919
    %v1296 = vpack.c.b16 %v924, %v920
    %v1297 = vpack.c.b16 %v929, %v925
    %v1298 = vpack.c.b16 %v930, %v926
    %v1299 = vpack.c.b16 %v931, %v927
    %v1300 = vpack.c.b16 %v932, %v928
    %v1301 = vpack.c.b16 %v937, %v933
    %v1302 = vpack.c.b16 %v938, %v934
    %v1303 = vpack.c.b16 %v939, %v935
    %v1304 = vpack.c.b16 %v940, %v936
    %v1305 = vpack.c.b16 %v945, %v941
    %v1306 = vpack.c.b16 %v946, %v942
    %v1307 = vpack.c.b16 %v947, %v943
    %v1308 = vpack.c.b16 %v948, %v944
    %v1309 = vpack.c.b16 %v953, %v949
    %v1310 = vpack.c.b16 %v954, %v950
    %v1311 = vpack.c.b16 %v955, %v951
    %v1312 = vpack.c.b16 %v956, %v952
    %v1313 = vpack.c.b16 %v961, %v957
    %v1314 = vpack.c.b16 %v962, %v958
    %v1315 = vpack.c.b16 %v963, %v959
    %v1316 = vpack.c.b16 %v964, %v960
    %v1317 = vpack.c.b16 %v969, %v965
    %v1318 = vpack.c.b16 %v970, %v966
    %v1319 = vpack.c.b16 %v971, %v967
    %v1320 = vpack.c.b16 %v972, %v968
    %v1321 = vpack.c.b16 %v977, %v973
    %v1322 = vpack.c.b16 %v978, %v974
    %v1323 = vpack.c.b16 %v979, %v975
    %v1324 = vpack.c.b16 %v980, %v976
    %v1325 = vpack.c.b16 %v985, %v981
    %v1326 = vpack.c.b16 %v986, %v982
    %v1327 = vpack.c.b16 %v987, %v983
    %v1328 = vpack.c.b16 %v988, %v984
    %v1329 = vpack.c.b16 %v993, %v989
    %v1330 = vpack.c.b16 %v994, %v990
    %v1331 = vpack.c.b16 %v995, %v991
    %v1332 = vpack.c.b16 %v996, %v992
    %v1333 = vpack.c.b16 %v1001, %v997
    %v1334 = vpack.c.b16 %v1002, %v998
    %v1335 = vpack.c.b16 %v1003, %v999
    %v1336 = vpack.c.b16 %v1004, %v1000
    %v1337 = vpack.c.b16 %v1009, %v1005
    %v1338 = vpack.c.b16 %v1010, %v1006
    %v1339 = vpack.c.b16 %v1011, %v1007
    %v1340 = vpack.c.b16 %v1012, %v1008
    %v1341 = vpack.c.b16 %v1017, %v1013
    %v1342 = vpack.c.b16 %v1018, %v1014
    %v1343 = vpack.c.b16 %v1019, %v1015
    %v1344 = vpack.c.b16 %v1020, %v1016
    %v1345 = vpack.c.b16 %v1025, %v1021
    %v1346 = vpack.c.b16 %v1026, %v1022
    %v1347 = vpack.c.b16 %v1027, %v1023
    %v1348 = vpack.c.b16 %v1028, %v1024
    %v1349 = vpack.c.b16 %v1033, %v1029
    %v1350 = vpack.c.b16 %v1034, %v1030
    %v1351 = vpack.c.b16 %v1035, %v1031
    %v1352 = vpack.c.b16 %v1036, %v1032
    %v1353 = vpack.c.b16 %v1041, %v1037
    %v1354 = vpack.c.b16 %v1042, %v1038
    %v1355 = vpack.c.b16 %v1043, %v1039
    %v1356 = vpack.c.b16 %v1044, %v1040
    %v1357 = vpack.c.b16 %v1049, %v1045
    %v1358 = vpack.c.b16 %v1050, %v1046
    %v1359 = vpack.c.b16 %v1051, %v1047
    %v1360 = vpack.c.b16 %v1052, %v1048
    %v1361 = vpack.c.b16 %v1057, %v1053
    %v1362 = vpack.c.b16 %v1058, %v1054
    %v1363 = vpack.c.b16 %v1059, %v1055
    %v1364 = vpack.c.b16 %v1060, %v1056
    %v1365 = vpack.c.b16 %v1065, %v1061
    %v1366 = vpack.c.b16 %v1066, %v1062
    %v1367 = vpack.c.b16 %v1067, %v1063
    %v1368 = vpack.c.b16 %v1068, %v1064
    %v1369 = vpack.c.b16 %v1073, %v1069
    %v1370 = vpack.c.b16 %v1074, %v1070
    %v1371 = vpack.c.b16 %v1075, %v1071
    %v1372 = vpack.c.b16 %v1076, %v1072
    %v1373 = vpack.c.b16 %v1081, %v1077
    %v1374 = vpack.c.b16 %v1082, %v1078
    %v1375 = vpack.c.b16 %v1083, %v1079
    %v1376 = vpack.c.b16 %v1084, %v1080
    %v1377 = vpack.c.b16 %v1089, %v1085
    %v1378 = vpack.c.b16 %v1090, %v1086
    %v1379 = vpack.c.b16 %v1091, %v1087
    %v1380 = vpack.c.b16 %v1092, %v1088
    %v1381 = vpack.c.b16 %v1097, %v1093
    %v1382 = vpack.c.b16 %v1098, %v1094
    %v1383 = vpack.c.b16 %v1099, %v1095
    %v1384 = vpack.c.b16 %v1100, %v1096
    %v1385 = vpack.c.b16 %v1105, %v1101
    %v1386 = vpack.c.b16 %v1106, %v1102
    %v1387 = vpack.c.b16 %v1107, %v1103
    %v1388 = vpack.c.b16 %v1108, %v1104
    %v1389 = vpack.c.b16 %v1113, %v1109
    %v1390 = vpack.c.b16 %v1114, %v1110
    %v1391 = vpack.c.b16 %v1115, %v1111
    %v1392 = vpack.c.b16 %v1116, %v1112
    %v1393 = vpack.c.b16 %v1121, %v1117
    %v1394 = vpack.c.b16 %v1122, %v1118
    %v1395 = vpack.c.b16 %v1123, %v1119
    %v1396 = vpack.c.b16 %v1124, %v1120
    %v1397 = vpack.c.b16 %v1129, %v1125
    %v1398 = vpack.c.b16 %v1130, %v1126
    %v1399 = vpack.c.b16 %v1131, %v1127
    %v1400 = vpack.c.b16 %v1132, %v1128
    %v1401 = vpack.c.b16 %v1137, %v1133
    %v1402 = vpack.c.b16 %v1138, %v1134
    %v1403 = vpack.c.b16 %v1139, %v1135
    %v1404 = vpack.c.b16 %v1140, %v1136
    %v1405 = vpack.c.b16 %v1145, %v1141
    %v1406 = vpack.c.b16 %v1146, %v1142
    %v1407 = vpack.c.b16 %v1147, %v1143
    %v1408 = vpack.c.b16 %v1148, %v1144
    %v1409 = vpack.c.b16 %v1153, %v1149
    %v1410 = vpack.c.b16 %v1154, %v1150
    %v1411 = vpack.c.b16 %v1155, %v1151
    %v1412 = vpack.c.b16 %v1156, %v1152
    %1669 = vmatprep.subr.bf16.mxu0 %v1186
    %1670 = vmatpush1.bf16.msra.mxu0 %v1185
    %1671 = vmatprep.subr.bf16.mxu0 %v1182
    %1672 = vmatpush1.bf16.msra.mxu0 %v1181
    %1673 = vmatprep.subr.bf16.mxu0 %v1178
    %1674 = vmatpush1.bf16.msra.mxu0 %v1177
    %1675 = vmatprep.subr.bf16.mxu0 %v1174
    %1676 = vmatpush1.bf16.msra.mxu0 %v1173
    %1677 = vmatprep.subr.bf16.mxu0 %v1170
    %1678 = vmatpush1.bf16.msra.mxu0 %v1169
    %1679 = vmatprep.subr.bf16.mxu0 %v1166
    %1680 = vmatpush1.bf16.msra.mxu0 %v1165
    %1681 = vmatprep.subr.bf16.mxu0 %v1162
    %1682 = vmatpush1.bf16.msra.mxu0 %v1161
    %1683 = vmatprep.subr.bf16.mxu0 %v1158
    %1684 = vmatpush1.bf16.msra.mxu0 %v1157
    %1685 = vmatprep.subr.bf16.mxu0 %v1218
    %1686 = vmatpush2.bf16.msra.mxu0 %v1217
    %1687 = vmatprep.subr.bf16.mxu0 %v1214
    %1688 = vmatpush2.bf16.msra.mxu0 %v1213
    %1689 = vmatprep.subr.bf16.mxu0 %v1210
    %1690 = vmatpush2.bf16.msra.mxu0 %v1209
    %1691 = vmatprep.subr.bf16.mxu0 %v1206
    %1692 = vmatpush2.bf16.msra.mxu0 %v1205
    %1693 = vmatprep.subr.bf16.mxu0 %v1202
    %1694 = vmatpush2.bf16.msra.mxu0 %v1201
    %1695 = vmatprep.subr.bf16.mxu0 %v1198
    %1696 = vmatpush2.bf16.msra.mxu0 %v1197
    %1697 = vmatprep.subr.bf16.mxu0 %v1194
    %1698 = vmatpush2.bf16.msra.mxu0 %v1193
    %1699 = vmatprep.subr.bf16.mxu0 %v1190
    %1700 = vmatpush2.bf16.msra.mxu0 %v1189
    %1701 = vmatprep.mubr.bf16.mxu0 %v369
    %1702 = vmatmul.mubr.bf16.gmra.mxu0 %v355
    %v1703 = vpop.f32.mrf.mxu0
    %v1704 = vadd.f32 %v314, %v1703
    %v1705 = vpop.f32.mrf.mxu0
    %v1706 = vadd.f32 %v318, %v1705
    %v1707 = vpop.f32.mrf.mxu0
    %v1708 = vpop.f32.mrf.mxu0
    %1709 = vdwg.mxu0
    %1710 = vmatprep.subr.bf16.mxu0 %v1250
    %1711 = vmatpush1.bf16.msra.mxu0 %v1249
    %1712 = vmatprep.subr.bf16.mxu0 %v1246
    %1713 = vmatpush1.bf16.msra.mxu0 %v1245
    %1714 = vmatprep.subr.bf16.mxu0 %v1242
    %1715 = vmatpush1.bf16.msra.mxu0 %v1241
    %1716 = vmatprep.subr.bf16.mxu0 %v1238
    %1717 = vmatpush1.bf16.msra.mxu0 %v1237
    %1718 = vmatprep.subr.bf16.mxu0 %v1234
    %1719 = vmatpush1.bf16.msra.mxu0 %v1233
    %1720 = vmatprep.subr.bf16.mxu0 %v1230
    %1721 = vmatpush1.bf16.msra.mxu0 %v1229
    %1722 = vmatprep.subr.bf16.mxu0 %v1226
    %1723 = vmatpush1.bf16.msra.mxu0 %v1225
    %1724 = vmatprep.subr.bf16.mxu0 %v1222
    %1725 = vmatpush1.bf16.msra.mxu0 %v1221
    %1726 = vmatprep.subr.bf16.mxu0 %v1282
    %1727 = vmatpush2.bf16.msra.mxu0 %v1281
    %1728 = vmatprep.subr.bf16.mxu0 %v1278
    %1729 = vmatpush2.bf16.msra.mxu0 %v1277
    %1730 = vmatprep.subr.bf16.mxu0 %v1274
    %1731 = vmatpush2.bf16.msra.mxu0 %v1273
    %1732 = vmatprep.subr.bf16.mxu0 %v1270
    %1733 = vmatpush2.bf16.msra.mxu0 %v1269
    %1734 = vmatprep.subr.bf16.mxu0 %v1266
    %1735 = vmatpush2.bf16.msra.mxu0 %v1265
    %1736 = vmatprep.subr.bf16.mxu0 %v1262
    %1737 = vmatpush2.bf16.msra.mxu0 %v1261
    %1738 = vmatprep.subr.bf16.mxu0 %v1258
    %1739 = vmatpush2.bf16.msra.mxu0 %v1257
    %1740 = vmatprep.subr.bf16.mxu0 %v1254
    %1741 = vmatpush2.bf16.msra.mxu0 %v1253
    %1742 = vmatprep.mubr.bf16.mxu0 %v379
    %1743 = vmatmul.mubr.bf16.gmra.mxu0 %v377
    %v1744 = vpop.f32.mrf.mxu0
    %v1745 = vadd.f32 %v1704, %v1744
    %v1746 = vpop.f32.mrf.mxu0
    %v1747 = vadd.f32 %v1706, %v1746
    %v1748 = vpop.f32.mrf.mxu0
    %v1749 = vpop.f32.mrf.mxu0
    %1750 = vdwg.mxu0
    %1751 = vmatprep.subr.bf16.mxu0 %v1314
    %1752 = vmatpush1.bf16.msra.mxu0 %v1313
    %1753 = vmatprep.subr.bf16.mxu0 %v1310
    %1754 = vmatpush1.bf16.msra.mxu0 %v1309
    %1755 = vmatprep.subr.bf16.mxu0 %v1306
    %1756 = vmatpush1.bf16.msra.mxu0 %v1305
    %1757 = vmatprep.subr.bf16.mxu0 %v1302
    %1758 = vmatpush1.bf16.msra.mxu0 %v1301
    %1759 = vmatprep.subr.bf16.mxu0 %v1298
    %1760 = vmatpush1.bf16.msra.mxu0 %v1297
    %1761 = vmatprep.subr.bf16.mxu0 %v1294
    %1762 = vmatpush1.bf16.msra.mxu0 %v1293
    %1763 = vmatprep.subr.bf16.mxu0 %v1290
    %1764 = vmatpush1.bf16.msra.mxu0 %v1289
    %1765 = vmatprep.subr.bf16.mxu0 %v1286
    %1766 = vmatpush1.bf16.msra.mxu0 %v1285
    %1767 = vmatprep.subr.bf16.mxu0 %v1346
    %1768 = vmatpush2.bf16.msra.mxu0 %v1345
    %1769 = vmatprep.subr.bf16.mxu0 %v1342
    %1770 = vmatpush2.bf16.msra.mxu0 %v1341
    %1771 = vmatprep.subr.bf16.mxu0 %v1338
    %1772 = vmatpush2.bf16.msra.mxu0 %v1337
    %1773 = vmatprep.subr.bf16.mxu0 %v1334
    %1774 = vmatpush2.bf16.msra.mxu0 %v1333
    %1775 = vmatprep.subr.bf16.mxu0 %v1330
    %1776 = vmatpush2.bf16.msra.mxu0 %v1329
    %1777 = vmatprep.subr.bf16.mxu0 %v1326
    %1778 = vmatpush2.bf16.msra.mxu0 %v1325
    %1779 = vmatprep.subr.bf16.mxu0 %v1322
    %1780 = vmatpush2.bf16.msra.mxu0 %v1321
    %1781 = vmatprep.subr.bf16.mxu0 %v1318
    %1782 = vmatpush2.bf16.msra.mxu0 %v1317
    %1783 = vmatprep.mubr.bf16.mxu0 %v376
    %1784 = vmatmul.mubr.bf16.gmra.mxu0 %v362
    %v1785 = vpop.f32.mrf.mxu0
    %v1786 = vadd.f32 %v1745, %v1785
    %v1787 = vpop.f32.mrf.mxu0
    %v1788 = vadd.f32 %v1747, %v1787
    %v1789 = vpop.f32.mrf.mxu0
    %v1790 = vpop.f32.mrf.mxu0
    %1791 = vdwg.mxu0
    %1792 = vmatprep.subr.bf16.mxu0 %v1378
    %1793 = vmatpush1.bf16.msra.mxu0 %v1377
    %1794 = vmatprep.subr.bf16.mxu0 %v1374
    %1795 = vmatpush1.bf16.msra.mxu0 %v1373
    %1796 = vmatprep.subr.bf16.mxu0 %v1370
    %1797 = vmatpush1.bf16.msra.mxu0 %v1369
    %1798 = vmatprep.subr.bf16.mxu0 %v1366
    %1799 = vmatpush1.bf16.msra.mxu0 %v1365
    %1800 = vmatprep.subr.bf16.mxu0 %v1362
    %1801 = vmatpush1.bf16.msra.mxu0 %v1361
    %1802 = vmatprep.subr.bf16.mxu0 %v1358
    %1803 = vmatpush1.bf16.msra.mxu0 %v1357
    %1804 = vmatprep.subr.bf16.mxu0 %v1354
    %1805 = vmatpush1.bf16.msra.mxu0 %v1353
    %1806 = vmatprep.subr.bf16.mxu0 %v1350
    %1807 = vmatpush1.bf16.msra.mxu0 %v1349
    %1808 = vmatprep.subr.bf16.mxu0 %v1410
    %1809 = vmatpush2.bf16.msra.mxu0 %v1409
    %1810 = vmatprep.subr.bf16.mxu0 %v1406
    %1811 = vmatpush2.bf16.msra.mxu0 %v1405
    %1812 = vmatprep.subr.bf16.mxu0 %v1402
    %1813 = vmatpush2.bf16.msra.mxu0 %v1401
    %1814 = vmatprep.subr.bf16.mxu0 %v1398
    %1815 = vmatpush2.bf16.msra.mxu0 %v1397
    %1816 = vmatprep.subr.bf16.mxu0 %v1394
    %1817 = vmatpush2.bf16.msra.mxu0 %v1393
    %1818 = vmatprep.subr.bf16.mxu0 %v1390
    %1819 = vmatpush2.bf16.msra.mxu0 %v1389
    %1820 = vmatprep.subr.bf16.mxu0 %v1386
    %1821 = vmatpush2.bf16.msra.mxu0 %v1385
    %1822 = vmatprep.subr.bf16.mxu0 %v1382
    %1823 = vmatpush2.bf16.msra.mxu0 %v1381
    %1824 = vmatprep.mubr.bf16.mxu0 %v380
    %1825 = vmatmul.mubr.bf16.gmra.mxu0 %v378
    %v1826 = vpop.f32.mrf.mxu0
    %v1827 = vadd.f32 %v1786, %v1826
    %v1828 = vpop.f32.mrf.mxu0
    %v1829 = vadd.f32 %v1788, %v1828
    %v1830 = vpop.f32.mrf.mxu0
    %v1831 = vpop.f32.mrf.mxu0
    %1832 = vdwg.mxu0
    %1833 = vmatprep.subr.bf16.mxu0 %v1188
    %1834 = vmatpush1.bf16.msra.mxu0 %v1187
    %1835 = vmatprep.subr.bf16.mxu0 %v1184
    %1836 = vmatpush1.bf16.msra.mxu0 %v1183
    %1837 = vmatprep.subr.bf16.mxu0 %v1180
    %1838 = vmatpush1.bf16.msra.mxu0 %v1179
    %1839 = vmatprep.subr.bf16.mxu0 %v1176
    %1840 = vmatpush1.bf16.msra.mxu0 %v1175
    %1841 = vmatprep.subr.bf16.mxu0 %v1172
    %1842 = vmatpush1.bf16.msra.mxu0 %v1171
    %1843 = vmatprep.subr.bf16.mxu0 %v1168
    %1844 = vmatpush1.bf16.msra.mxu0 %v1167
    %1845 = vmatprep.subr.bf16.mxu0 %v1164
    %1846 = vmatpush1.bf16.msra.mxu0 %v1163
    %1847 = vmatprep.subr.bf16.mxu0 %v1160
    %1848 = vmatpush1.bf16.msra.mxu0 %v1159
    %1849 = vmatprep.subr.bf16.mxu0 %v1220
    %1850 = vmatpush2.bf16.msra.mxu0 %v1219
    %1851 = vmatprep.subr.bf16.mxu0 %v1216
    %1852 = vmatpush2.bf16.msra.mxu0 %v1215
    %1853 = vmatprep.subr.bf16.mxu0 %v1212
    %1854 = vmatpush2.bf16.msra.mxu0 %v1211
    %1855 = vmatprep.subr.bf16.mxu0 %v1208
    %1856 = vmatpush2.bf16.msra.mxu0 %v1207
    %1857 = vmatprep.subr.bf16.mxu0 %v1204
    %1858 = vmatpush2.bf16.msra.mxu0 %v1203
    %1859 = vmatprep.subr.bf16.mxu0 %v1200
    %1860 = vmatpush2.bf16.msra.mxu0 %v1199
    %1861 = vmatprep.subr.bf16.mxu0 %v1196
    %1862 = vmatpush2.bf16.msra.mxu0 %v1195
    %1863 = vmatprep.subr.bf16.mxu0 %v1192
    %1864 = vmatpush2.bf16.msra.mxu0 %v1191
    %1865 = vmatprep.mubr.bf16.mxu0 %v369
    %1866 = vmatmul.mubr.bf16.gmra.mxu0 %v355
    %v1867 = vpop.f32.mrf.mxu0
    %v1868 = vadd.f32 %v322, %v1867
    %v1869 = vpop.f32.mrf.mxu0
    %v1870 = vadd.f32 %v326, %v1869
    %v1871 = vpop.f32.mrf.mxu0
    %v1872 = vpop.f32.mrf.mxu0
    %1873 = vdwg.mxu0
    %1874 = vmatprep.subr.bf16.mxu0 %v1252
    %1875 = vmatpush1.bf16.msra.mxu0 %v1251
    %1876 = vmatprep.subr.bf16.mxu0 %v1248
    %1877 = vmatpush1.bf16.msra.mxu0 %v1247
    %1878 = vmatprep.subr.bf16.mxu0 %v1244
    %1879 = vmatpush1.bf16.msra.mxu0 %v1243
    %1880 = vmatprep.subr.bf16.mxu0 %v1240
    %1881 = vmatpush1.bf16.msra.mxu0 %v1239
    %1882 = vmatprep.subr.bf16.mxu0 %v1236
    %1883 = vmatpush1.bf16.msra.mxu0 %v1235
    %1884 = vmatprep.subr.bf16.mxu0 %v1232
    %1885 = vmatpush1.bf16.msra.mxu0 %v1231
    %1886 = vmatprep.subr.bf16.mxu0 %v1228
    %1887 = vmatpush1.bf16.msra.mxu0 %v1227
    %1888 = vmatprep.subr.bf16.mxu0 %v1224
    %1889 = vmatpush1.bf16.msra.mxu0 %v1223
    %1890 = vmatprep.subr.bf16.mxu0 %v1284
    %1891 = vmatpush2.bf16.msra.mxu0 %v1283
    %1892 = vmatprep.subr.bf16.mxu0 %v1280
    %1893 = vmatpush2.bf16.msra.mxu0 %v1279
    %1894 = vmatprep.subr.bf16.mxu0 %v1276
    %1895 = vmatpush2.bf16.msra.mxu0 %v1275
    %1896 = vmatprep.subr.bf16.mxu0 %v1272
    %1897 = vmatpush2.bf16.msra.mxu0 %v1271
    %1898 = vmatprep.subr.bf16.mxu0 %v1268
    %1899 = vmatpush2.bf16.msra.mxu0 %v1267
    %1900 = vmatprep.subr.bf16.mxu0 %v1264
    %1901 = vmatpush2.bf16.msra.mxu0 %v1263
    %1902 = vmatprep.subr.bf16.mxu0 %v1260
    %1903 = vmatpush2.bf16.msra.mxu0 %v1259
    %1904 = vmatprep.subr.bf16.mxu0 %v1256
    %1905 = vmatpush2.bf16.msra.mxu0 %v1255
    %1906 = vmatprep.mubr.bf16.mxu0 %v379
    %1907 = vmatmul.mubr.bf16.gmra.mxu0 %v377
    %v1908 = vpop.f32.mrf.mxu0
    %v1909 = vadd.f32 %v1868, %v1908
    %v1910 = vpop.f32.mrf.mxu0
    %v1911 = vadd.f32 %v1870, %v1910
    %v1912 = vpop.f32.mrf.mxu0
    %v1913 = vpop.f32.mrf.mxu0
    %1914 = vdwg.mxu0
    %1915 = vmatprep.subr.bf16.mxu0 %v1316
    %1916 = vmatpush1.bf16.msra.mxu0 %v1315
    %1917 = vmatprep.subr.bf16.mxu0 %v1312
    %1918 = vmatpush1.bf16.msra.mxu0 %v1311
    %1919 = vmatprep.subr.bf16.mxu0 %v1308
    %1920 = vmatpush1.bf16.msra.mxu0 %v1307
    %1921 = vmatprep.subr.bf16.mxu0 %v1304
    %1922 = vmatpush1.bf16.msra.mxu0 %v1303
    %1923 = vmatprep.subr.bf16.mxu0 %v1300
    %1924 = vmatpush1.bf16.msra.mxu0 %v1299
    %1925 = vmatprep.subr.bf16.mxu0 %v1296
    %1926 = vmatpush1.bf16.msra.mxu0 %v1295
    %1927 = vmatprep.subr.bf16.mxu0 %v1292
    %1928 = vmatpush1.bf16.msra.mxu0 %v1291
    %1929 = vmatprep.subr.bf16.mxu0 %v1288
    %1930 = vmatpush1.bf16.msra.mxu0 %v1287
    %1931 = vmatprep.subr.bf16.mxu0 %v1348
    %1932 = vmatpush2.bf16.msra.mxu0 %v1347
    %1933 = vmatprep.subr.bf16.mxu0 %v1344
    %1934 = vmatpush2.bf16.msra.mxu0 %v1343
    %1935 = vmatprep.subr.bf16.mxu0 %v1340
    %1936 = vmatpush2.bf16.msra.mxu0 %v1339
    %1937 = vmatprep.subr.bf16.mxu0 %v1336
    %1938 = vmatpush2.bf16.msra.mxu0 %v1335
    %1939 = vmatprep.subr.bf16.mxu0 %v1332
    %1940 = vmatpush2.bf16.msra.mxu0 %v1331
    %1941 = vmatprep.subr.bf16.mxu0 %v1328
    %1942 = vmatpush2.bf16.msra.mxu0 %v1327
    %1943 = vmatprep.subr.bf16.mxu0 %v1324
    %1944 = vmatpush2.bf16.msra.mxu0 %v1323
    %1945 = vmatprep.subr.bf16.mxu0 %v1320
    %1946 = vmatpush2.bf16.msra.mxu0 %v1319
    %1947 = vmatprep.mubr.bf16.mxu0 %v376
    %1948 = vmatmul.mubr.bf16.gmra.mxu0 %v362
    %v1949 = vpop.f32.mrf.mxu0
    %v1950 = vadd.f32 %v1909, %v1949
    %v1951 = vpop.f32.mrf.mxu0
    %v1952 = vadd.f32 %v1911, %v1951
    %v1953 = vpop.f32.mrf.mxu0
    %v1954 = vpop.f32.mrf.mxu0
    %1955 = vdwg.mxu0
    %1956 = vmatprep.subr.bf16.mxu0 %v1380
    %1957 = vmatpush1.bf16.msra.mxu0 %v1379
    %1958 = vmatprep.subr.bf16.mxu0 %v1376
    %1959 = vmatpush1.bf16.msra.mxu0 %v1375
    %1960 = vmatprep.subr.bf16.mxu0 %v1372
    %1961 = vmatpush1.bf16.msra.mxu0 %v1371
    %1962 = vmatprep.subr.bf16.mxu0 %v1368
    %1963 = vmatpush1.bf16.msra.mxu0 %v1367
    %1964 = vmatprep.subr.bf16.mxu0 %v1364
    %1965 = vmatpush1.bf16.msra.mxu0 %v1363
    %1966 = vmatprep.subr.bf16.mxu0 %v1360
    %1967 = vmatpush1.bf16.msra.mxu0 %v1359
    %1968 = vmatprep.subr.bf16.mxu0 %v1356
    %1969 = vmatpush1.bf16.msra.mxu0 %v1355
    %1970 = vmatprep.subr.bf16.mxu0 %v1352
    %1971 = vmatpush1.bf16.msra.mxu0 %v1351
    %1972 = vmatprep.subr.bf16.mxu0 %v1412
    %1973 = vmatpush2.bf16.msra.mxu0 %v1411
    %1974 = vmatprep.subr.bf16.mxu0 %v1408
    %1975 = vmatpush2.bf16.msra.mxu0 %v1407
    %1976 = vmatprep.subr.bf16.mxu0 %v1404
    %1977 = vmatpush2.bf16.msra.mxu0 %v1403
    %1978 = vmatprep.subr.bf16.mxu0 %v1400
    %1979 = vmatpush2.bf16.msra.mxu0 %v1399
    %1980 = vmatprep.subr.bf16.mxu0 %v1396
    %1981 = vmatpush2.bf16.msra.mxu0 %v1395
    %1982 = vmatprep.subr.bf16.mxu0 %v1392
    %1983 = vmatpush2.bf16.msra.mxu0 %v1391
    %1984 = vmatprep.subr.bf16.mxu0 %v1388
    %1985 = vmatpush2.bf16.msra.mxu0 %v1387
    %1986 = vmatprep.subr.bf16.mxu0 %v1384
    %1987 = vmatpush2.bf16.msra.mxu0 %v1383
    %1988 = vmatprep.mubr.bf16.mxu0 %v380
    %1989 = vmatmul.mubr.bf16.gmra.mxu0 %v378
    %v1990 = vpop.f32.mrf.mxu0
    %v1991 = vadd.f32 %v1950, %v1990
    %v1992 = vpop.f32.mrf.mxu0
    %v1993 = vadd.f32 %v1952, %v1992
    %v1994 = vpop.f32.mrf.mxu0
    %v1995 = vpop.f32.mrf.mxu0
    %1996 = vdwg.mxu0
    %vm1997 = vcmask 1041408
    %v1998 = vsel %vm1997, %v1827, -inf
    %1999 = vmax.xlane.f32.xlu0 %v1998
    %v2000 = vpop.xlane.xlu0 %1999
    %v2001 = vsub.f32 %v1827, %v2000
    %v2002 = vmul.f32 %v2001, 1.442695
    %v2003 = vpow.pop %v2002
    %v2004 = vsel %vm1997, %v2003, 0.0
    %2005 = vadd.xlane.f32.xlu0 %v2004
    %v2006 = vpop.xlane.xlu0 %2005
    %v2007 = vrcp.pop %v2006
    %v2008 = vmul.f32 %v2003, %v2007
    %v2009 = vadd.f32 %v2008, 0.0
    %v2010 = vsel %vm1997, %v1829, -inf
    %2011 = vmax.xlane.f32.xlu0 %v2010
    %v2012 = vpop.xlane.xlu0 %2011
    %v2013 = vsub.f32 %v1829, %v2012
    %v2014 = vmul.f32 %v2013, 1.442695
    %v2015 = vpow.pop %v2014
    %v2016 = vsel %vm1997, %v2015, 0.0
    %2017 = vadd.xlane.f32.xlu0 %v2016
    %v2018 = vpop.xlane.xlu0 %2017
    %v2019 = vrcp.pop %v2018
    %v2020 = vmul.f32 %v2015, %v2019
    %v2021 = vadd.f32 %v2009, %v2020
    %v2022 = vsel %vm1997, %v1991, -inf
    %2023 = vmax.xlane.f32.xlu0 %v2022
    %v2024 = vpop.xlane.xlu0 %2023
    %v2025 = vsub.f32 %v1991, %v2024
    %v2026 = vmul.f32 %v2025, 1.442695
    %v2027 = vpow.pop %v2026
    %v2028 = vsel %vm1997, %v2027, 0.0
    %2029 = vadd.xlane.f32.xlu0 %v2028
    %v2030 = vpop.xlane.xlu0 %2029
    %v2031 = vrcp.pop %v2030
    %v2032 = vmul.f32 %v2027, %v2031
    %v2033 = vadd.f32 %v2021, %v2032
    %v2034 = vsel %vm1997, %v1993, -inf
    %2035 = vmax.xlane.f32.xlu0 %v2034
    %v2036 = vpop.xlane.xlu0 %2035
    %v2037 = vsub.f32 %v1993, %v2036
    %v2038 = vmul.f32 %v2037, 1.442695
    %v2039 = vpow.pop %v2038
    %v2040 = vsel %vm1997, %v2039, 0.0
    %2041 = vadd.xlane.f32.xlu0 %v2040
    %v2042 = vpop.xlane.xlu0 %2041
    %v2043 = vrcp.pop %v2042
    %v2044 = vmul.f32 %v2039, %v2043
    %v2045 = vadd.f32 %v2033, %v2044
    %v2046 = vmul.f32 %v2045, 0.25
    %2047 = vst [vmem:[#allocation8] sm:$0x3] %v2046
    // Predicated region
    $region26: #{tpu_custom_call.1} parent=1 // pred_check
      _
    $region27: #{tpu_custom_call.1} parent=1 // pred_check_branch
      %2049 = sbr.rel (0) target = $region29
    $region28: #{tpu_custom_call.1} parent=1 // pred_region
      %s2051 = ssub.s32 32, 32
      %2052 = vsyncadd [#allocation4], %s2051
      %s2054 = sshll.u32 [#allocation8], 4
      %s2055 = int_to_ptr.vmem [resolvable:$true] %s2054
      %2057 = dma.vmem_to_hbm [thread:$0]  %s2055, 32, %s3, [#allocation4]
    $region29: #{tpu_custom_call.1} parent=1 // pred_fallthru
      _
    // Predicated region
    $region30: #{tpu_custom_call.1} parent=1 // pred_check
      _
    $region31: #{tpu_custom_call.1} parent=1 // pred_check_branch
      %2059 = sbr.rel (0) target = $region33
    $region32: #{tpu_custom_call.1} parent=1 // pred_region
      %2060 = dma.done [#allocation4], 32
    $region33: #{tpu_custom_call.1} parent=1 // pred_fallthru
      _
    %2061 = vsyncpa [#allocation3], 1
    %2062 = vsyncpa [#allocation6], 1
    %2063 = vsyncpa [#allocation4], 1

</llo_original>
